<compile_context>
chip_gen: v6e
topology: v6e:2x2x1
jax: 0.10.0
libtpu: 0.0.40
codegen_flags: <defaults>
</compile_context>

<pallas_src>
import functools

import jax
import jax.numpy as jnp
from jax import lax
from jax.experimental import pallas as pl
from jax.experimental.pallas import tpu as pltpu


def _round_up(x, m):
    return ((x + m - 1) // m) * m


def _pick_tile(total, target, mult):
    """Largest tile <= target that is a multiple of `mult` and divides `total`."""
    t = min(target, total)
    t = max((t // mult) * mult, mult)
    while total % t:
        t -= mult
    return t


# --------------------------------------------------------------------------
# Kernel A: MLP forward + energy + analytic (negated) grad wrt fingerprints
# --------------------------------------------------------------------------
def _mlp_energy_grad_kernel(n_layers, x_ref, idx_ref, *rest):
    n_params = 3 * n_layers + 2
    param_refs = rest[:n_params]
    energy_ref, g_ref = rest[-2], rest[-1]

    x = x_ref[...]                                   # (N, D) f32
    n_atoms = x.shape[0]

    # ---------------- MLP forward ----------------
    h = x
    hiddens = []
    for i in range(n_layers):
        W = param_refs[3 * i][...]                   # (in, out)
        b = param_refs[3 * i + 2][...]               # (1, out)
        h = jnp.tanh(jnp.dot(h, W, preferred_element_type=jnp.float32) + b)
        hiddens.append(h)

    w_out_row = param_refs[3 * n_layers][...]        # (1, H)  == W_out^T
    b_out = param_refs[3 * n_layers + 1][...]        # (1, 1)
    # Degenerate (N,H)@(H,1) head done on the VPU instead of a 1-column MXU matmul.
    o = jnp.sum(h * w_out_row, axis=-1, keepdims=True) + b_out    # (N, 1)

    # ------------- energy: scatter-sum over images (lane-dense output) -------
    idx_col = idx_ref[...]                           # (N, 1) int32
    n_images_pad = energy_ref.shape[1]
    img_iota = lax.broadcasted_iota(jnp.int32, (n_atoms, n_images_pad), 1)
    onehot = (img_iota == idx_col).astype(jnp.float32)             # (N, n_img_pad)
    energy_ref[...] = jnp.sum(onehot * o, axis=0, keepdims=True)   # (1, n_img_pad)

    # ------------- analytic backward: d(sum o)/d(fingerprints) ---------------
    g = jnp.broadcast_to(w_out_row, (n_atoms, w_out_row.shape[1]))  # (N, H)
    for i in range(n_layers - 1, -1, -1):
        WT = param_refs[3 * i + 1][...]              # (out, in) precomputed transpose
        g = g * (1.0 - hiddens[i] * hiddens[i])      # tanh'
        g = jnp.dot(g, WT, preferred_element_type=jnp.float32)
    # Sign folded here: Kernel B accumulates forces = (-grad) @ fprimes directly.
    g_ref[...] = -g                                  # (N, D)


# --------------------------------------------------------------------------
# Kernel B: forces accumulation, sparse-block skipping, resident LHS
# --------------------------------------------------------------------------
def _forces_kernel(nnz_ref, kblk_ref, g_ref, fp_ref, f_ref):
    j = pl.program_id(0)       # output column block (parallel)
    k = pl.program_id(1)       # compacted contraction block (arbitrary)

    @pl.when(k == 0)
    def _():
        f_ref[...] = jnp.zeros_like(f_ref)

    # Only the first nnz[j] grid steps carry real (nonzero) fprimes blocks; the
    # remaining steps keep the same fp block index so their DMA is deduplicated.
    @pl.when(k < nnz_ref[j])
    def _():
        kb = kblk_ref[j, k]                                    # real k-block id
        g_blk = g_ref[pl.ds(kb, 1), :]                         # (1, tk), resident LHS
        f_ref[...] += jnp.dot(g_blk, fp_ref[...],
                              preferred_element_type=jnp.float32)


# --------------------------------------------------------------------------
# Wrapper
# --------------------------------------------------------------------------
def singlenn_forward(fingerprints, image_idx, fprimes, params, n_images,
                     *, tk_target=1024, tc_target=2048):
    """Pallas-backed forward. Returns (energy (n_images,), forces (N, 3))."""
    n_atoms, input_dim = fingerprints.shape
    n_layers = len(params) - 1

    # Hoist all weight transposes out of the kernel (free layout plumbing).
    flat_params = []
    for W, b in params[:-1]:
        Wf = W.astype(jnp.float32)
        flat_params += [Wf, Wf.T, b.reshape(1, -1).astype(jnp.float32)]
    W_out, b_out = params[-1]
    flat_params += [W_out.astype(jnp.float32).reshape(1, -1),   # (1, H) == W_out^T
                    b_out.astype(jnp.float32).reshape(1, 1)]

    idx_col = image_idx.reshape(n_atoms, 1).astype(jnp.int32)
    n_images_pad = _round_up(n_images, 128)

    n_inputs_a = 2 + len(flat_params)
    energy_row, g_neg = pl.pallas_call(
        functools.partial(_mlp_energy_grad_kernel, n_layers),
        out_shape=(
            jax.ShapeDtypeStruct((1, n_images_pad), jnp.float32),
            jax.ShapeDtypeStruct((n_atoms, input_dim), jnp.float32),
        ),
        in_specs=[pl.BlockSpec(memory_space=pltpu.MemorySpace.VMEM)] * n_inputs_a,
        out_specs=(
            pl.BlockSpec(memory_space=pltpu.MemorySpace.VMEM),
            pl.BlockSpec(memory_space=pltpu.MemorySpace.VMEM),
        ),
    )(fingerprints.astype(jnp.float32), idx_col, *flat_params)

    # ----- forces: tiled contraction over the (N*D) axis of fprimes -----
    K = n_atoms * input_dim
    C = 3 * n_atoms
    K_pad = _round_up(K, 128)
    C_pad = _round_up(C, 128)
    tk = _pick_tile(K_pad, tk_target, 128)
    # Keep >= 2 column blocks when possible so the "parallel" axis can be split
    # across v7x's two TensorCores (negligible cost on single-TC v5e/v6e).
    tc_cap = min(tc_target, C_pad // 2) if C_pad >= 256 else tc_target
    tc = _pick_tile(C_pad, tc_cap, 128)
    nkb, ncb = K_pad // tk, C_pad // tc

    g_flat = g_neg.reshape(1, K)
    if K_pad != K:
        g_flat = jnp.pad(g_flat, ((0, 0), (0, K_pad - K)))
    g_blocks = g_flat.reshape(nkb, tk)               # resident LHS, row per k-block

    fp = fprimes.astype(jnp.float32)
    if (K_pad != K) or (C_pad != C):
        fp = jnp.pad(fp, ((0, K_pad - K), (0, C_pad - C)))

    # --- block-sparsity metadata (scalar-prefetched into SMEM) ---
    # TODO(synk): in production this block map would come directly from the sparse
    #             fprimes structure instead of a dense scan.
    blk_nz = jnp.any(fp.reshape(nkb, tk, ncb, tc) != 0.0, axis=(1, 3))   # (nkb, ncb)
    nz = blk_nz.T.astype(jnp.int32)                                       # (ncb, nkb)
    nnz = jnp.sum(nz, axis=1).astype(jnp.int32)                           # (ncb,)
    order = jnp.argsort(1 - nz, axis=1).astype(jnp.int32)                 # nonzero blocks first
    pos = jnp.arange(nkb, dtype=jnp.int32)[None, :]
    last = jnp.take_along_axis(order, jnp.maximum(nnz - 1, 0)[:, None], axis=1)
    kblk = jnp.where(pos < jnp.maximum(nnz, 1)[:, None], order, last).astype(jnp.int32)

    # Raise the scoped VMEM limit for the larger tiles; cap below v7x's 64 MiB.
    vmem_bytes = 2 * tk * tc * 4 + 2 * K_pad * 4 + 4 * tc * 4 + (2 << 20)
    vmem_limit = int(min(max(vmem_bytes, 32 * 1024 * 1024), 48 * 1024 * 1024))

    forces_row = pl.pallas_call(
        _forces_kernel,
        out_shape=jax.ShapeDtypeStruct((1, C_pad), jnp.float32),
        grid_spec=pltpu.PrefetchScalarGridSpec(
            num_scalar_prefetch=2,
            grid=(ncb, nkb),
            in_specs=[
                # grad: fully VMEM-resident across the whole grid
                pl.BlockSpec((nkb, tk), lambda j, k, nnz, kblk: (0, 0)),
                # fprimes: nonzero k-blocks in compacted order; repeats dedup DMA
                pl.BlockSpec((tk, tc), lambda j, k, nnz, kblk: (kblk[j, k], j)),
            ],
            out_specs=pl.BlockSpec((1, tc), lambda j, k, nnz, kblk: (0, j)),
        ),
        compiler_params=pltpu.CompilerParams(
            dimension_semantics=("parallel", "arbitrary"),
            vmem_limit_bytes=vmem_limit),
    )(nnz, kblk, g_blocks, fp)

    energy = energy_row[0, :n_images]
    forces = forces_row[0, :C].reshape(n_atoms, 3)
    return energy, forces


# --------------------------------------------------------------------------
# Pure-JAX reference (mirrors the torch forward with autograd)
# --------------------------------------------------------------------------
def ref_forward(fingerprints, image_idx, fprimes, params, n_images):
    def mlp(x):
        h = x
        for W, b in params[:-1]:
            h = jnp.tanh(h @ W + b)
        W, b = params[-1]
        return h @ W + b                              # (N, 1)

    o = jnp.sum(mlp(fingerprints), axis=1)            # (N,)
    energy = jax.ops.segment_sum(o, image_idx, num_segments=n_images)
    grad = jax.grad(lambda x: jnp.sum(mlp(x)))(fingerprints).reshape(-1)
    forces = -(fprimes.T @ grad).reshape(-1, 3)
    return energy, forces


if __name__ == "__main__":
    key = jax.random.PRNGKey(0)

    # Small shapes consistent with SingleNN defaults (num_nodes=20, num_layers=5).
    n_images = 2
    atoms_per_image = 16
    n_atoms = n_images * atoms_per_image              # 32 atoms total
    input_dim = 32                                    # K = n_atoms * input_dim = 1024
    num_nodes, num_layers = 20, 5

    # Deterministic Xavier-uniform init (biases zero), weights stored (in, out).
    sizes = [input_dim] + [num_nodes] * num_layers + [1]
    params = []
    for i in range(len(sizes) - 1):
        key, sub = jax.random.split(key)
        fan_in, fan_out = sizes[i], sizes[i + 1]
        bound = (6.0 / (fan_in + fan_out)) ** 0.5
        W = jax.random.uniform(sub, (fan_in, fan_out), jnp.float32, -bound, bound)
        b = jnp.zeros((fan_out,), jnp.float32)
        params.append((W, b))

    key, k_fp, k_pr = jax.random.split(key, 3)
    fingerprints = jax.random.normal(k_fp, (n_atoms, input_dim), jnp.float32)
    image_idx = jnp.repeat(jnp.arange(n_images, dtype=jnp.int32), atoms_per_image)
    fprimes = 0.1 * jax.random.normal(k_pr, (n_atoms * input_dim, 3 * n_atoms), jnp.float32)
    # Make fprimes block-sparse (a band of all-zero derivative rows) so the
    # nonzero-block skip path of Kernel B is exercised in the second run.
    row_ids = jnp.arange(n_atoms * input_dim)
    fprimes = jnp.where(((row_ids >= 256) & (row_ids < 768))[:, None], 0.0, fprimes)

    e_ref, f_ref = ref_forward(fingerprints, image_idx, fprimes, params, n_images)

    # Run 1: default (large-tile) config — single k-block, dense path.
    energy, forces = singlenn_forward(fingerprints, image_idx, fprimes, params, n_images)
    energy, forces = jax.block_until_ready((energy, forces))
    assert energy.shape == (n_images,) and forces.shape == (n_atoms, 3)
    assert jnp.allclose(energy, e_ref, atol=1e-4, rtol=1e-4), (energy, e_ref)
    assert jnp.allclose(forces, f_ref, atol=1e-4, rtol=1e-4), (forces, f_ref)

    # Run 2: small tiles so the contraction has 4 k-blocks, two of which are all
    # zero — exercises the scalar-prefetched compaction + pl.when skip path.
    energy2, forces2 = singlenn_forward(fingerprints, image_idx, fprimes, params,
                                        n_images, tk_target=256, tc_target=128)
    energy2, forces2 = jax.block_until_ready((energy2, forces2))
    assert jnp.allclose(energy2, e_ref, atol=1e-4, rtol=1e-4), (energy2, e_ref)
    assert jnp.allclose(forces2, f_ref, atol=1e-4, rtol=1e-4), (forces2, f_ref)

    print("KERNEL_OK")
</pallas_src>

<mosaic_0001>
module attributes {stable_mosaic.version = 11 : i64} {
  func.func @_mlp_energy_grad_kernel(%arg0: memref<32x32xf32, #tpu.memory_space<vmem>>, %arg1: memref<32x1xi32, #tpu.memory_space<vmem>>, %arg2: memref<32x20xf32, #tpu.memory_space<vmem>>, %arg3: memref<20x32xf32, #tpu.memory_space<vmem>>, %arg4: memref<1x20xf32, #tpu.memory_space<vmem>>, %arg5: memref<20x20xf32, #tpu.memory_space<vmem>>, %arg6: memref<20x20xf32, #tpu.memory_space<vmem>>, %arg7: memref<1x20xf32, #tpu.memory_space<vmem>>, %arg8: memref<20x20xf32, #tpu.memory_space<vmem>>, %arg9: memref<20x20xf32, #tpu.memory_space<vmem>>, %arg10: memref<1x20xf32, #tpu.memory_space<vmem>>, %arg11: memref<20x20xf32, #tpu.memory_space<vmem>>, %arg12: memref<20x20xf32, #tpu.memory_space<vmem>>, %arg13: memref<1x20xf32, #tpu.memory_space<vmem>>, %arg14: memref<20x20xf32, #tpu.memory_space<vmem>>, %arg15: memref<20x20xf32, #tpu.memory_space<vmem>>, %arg16: memref<1x20xf32, #tpu.memory_space<vmem>>, %arg17: memref<1x20xf32, #tpu.memory_space<vmem>>, %arg18: memref<1x1xf32, #tpu.memory_space<vmem>>, %arg19: memref<1x128xf32, #tpu.memory_space<vmem>>, %arg20: memref<32x32xf32, #tpu.memory_space<vmem>>) attributes {dimension_semantics = [], scalar_prefetch = 0 : i64, scratch_operands = 0 : i64, tpu.core_type = #tpu.core_type<tc>} {
    %c0 = arith.constant 0 : index
    %c0_0 = arith.constant 0 : index
    %0 = vector.load %arg0[%c0, %c0_0] : memref<32x32xf32, #tpu.memory_space<vmem>>, vector<32x32xf32>
    %c0_1 = arith.constant 0 : index
    %c0_2 = arith.constant 0 : index
    %1 = vector.load %arg2[%c0_1, %c0_2] : memref<32x20xf32, #tpu.memory_space<vmem>>, vector<32x20xf32>
    %c0_3 = arith.constant 0 : index
    %c0_4 = arith.constant 0 : index
    %2 = vector.load %arg4[%c0_3, %c0_4] : memref<1x20xf32, #tpu.memory_space<vmem>>, vector<1x20xf32>
    %cst = arith.constant dense<0.000000e+00> : vector<32x20xf32>
    %3 = tpu.matmul %0, %1, %cst {dimension_numbers = #tpu.dot_dimension_numbers<[1], [0], [0], [1], [0, 0, 1, 1], [], []>} : vector<32x32xf32>, vector<32x20xf32>, vector<32x20xf32> -> vector<32x20xf32>
    %4 = vector.broadcast %2 : vector<1x20xf32> to vector<32x20xf32>
    %5 = arith.addf %3, %4 : vector<32x20xf32>
    %6 = math.tanh %5 : vector<32x20xf32>
    %c0_5 = arith.constant 0 : index
    %c0_6 = arith.constant 0 : index
    %7 = vector.load %arg5[%c0_5, %c0_6] : memref<20x20xf32, #tpu.memory_space<vmem>>, vector<20x20xf32>
    %c0_7 = arith.constant 0 : index
    %c0_8 = arith.constant 0 : index
    %8 = vector.load %arg7[%c0_7, %c0_8] : memref<1x20xf32, #tpu.memory_space<vmem>>, vector<1x20xf32>
    %cst_9 = arith.constant dense<0.000000e+00> : vector<32x20xf32>
    %9 = tpu.matmul %6, %7, %cst_9 {dimension_numbers = #tpu.dot_dimension_numbers<[1], [0], [0], [1], [0, 0, 1, 1], [], []>} : vector<32x20xf32>, vector<20x20xf32>, vector<32x20xf32> -> vector<32x20xf32>
    %10 = vector.broadcast %8 : vector<1x20xf32> to vector<32x20xf32>
    %11 = arith.addf %9, %10 : vector<32x20xf32>
    %12 = math.tanh %11 : vector<32x20xf32>
    %c0_10 = arith.constant 0 : index
    %c0_11 = arith.constant 0 : index
    %13 = vector.load %arg8[%c0_10, %c0_11] : memref<20x20xf32, #tpu.memory_space<vmem>>, vector<20x20xf32>
    %c0_12 = arith.constant 0 : index
    %c0_13 = arith.constant 0 : index
    %14 = vector.load %arg10[%c0_12, %c0_13] : memref<1x20xf32, #tpu.memory_space<vmem>>, vector<1x20xf32>
    %cst_14 = arith.constant dense<0.000000e+00> : vector<32x20xf32>
    %15 = tpu.matmul %12, %13, %cst_14 {dimension_numbers = #tpu.dot_dimension_numbers<[1], [0], [0], [1], [0, 0, 1, 1], [], []>} : vector<32x20xf32>, vector<20x20xf32>, vector<32x20xf32> -> vector<32x20xf32>
    %16 = vector.broadcast %14 : vector<1x20xf32> to vector<32x20xf32>
    %17 = arith.addf %15, %16 : vector<32x20xf32>
    %18 = math.tanh %17 : vector<32x20xf32>
    %c0_15 = arith.constant 0 : index
    %c0_16 = arith.constant 0 : index
    %19 = vector.load %arg11[%c0_15, %c0_16] : memref<20x20xf32, #tpu.memory_space<vmem>>, vector<20x20xf32>
    %c0_17 = arith.constant 0 : index
    %c0_18 = arith.constant 0 : index
    %20 = vector.load %arg13[%c0_17, %c0_18] : memref<1x20xf32, #tpu.memory_space<vmem>>, vector<1x20xf32>
    %cst_19 = arith.constant dense<0.000000e+00> : vector<32x20xf32>
    %21 = tpu.matmul %18, %19, %cst_19 {dimension_numbers = #tpu.dot_dimension_numbers<[1], [0], [0], [1], [0, 0, 1, 1], [], []>} : vector<32x20xf32>, vector<20x20xf32>, vector<32x20xf32> -> vector<32x20xf32>
    %22 = vector.broadcast %20 : vector<1x20xf32> to vector<32x20xf32>
    %23 = arith.addf %21, %22 : vector<32x20xf32>
    %24 = math.tanh %23 : vector<32x20xf32>
    %c0_20 = arith.constant 0 : index
    %c0_21 = arith.constant 0 : index
    %25 = vector.load %arg14[%c0_20, %c0_21] : memref<20x20xf32, #tpu.memory_space<vmem>>, vector<20x20xf32>
    %c0_22 = arith.constant 0 : index
    %c0_23 = arith.constant 0 : index
    %26 = vector.load %arg16[%c0_22, %c0_23] : memref<1x20xf32, #tpu.memory_space<vmem>>, vector<1x20xf32>
    %cst_24 = arith.constant dense<0.000000e+00> : vector<32x20xf32>
    %27 = tpu.matmul %24, %25, %cst_24 {dimension_numbers = #tpu.dot_dimension_numbers<[1], [0], [0], [1], [0, 0, 1, 1], [], []>} : vector<32x20xf32>, vector<20x20xf32>, vector<32x20xf32> -> vector<32x20xf32>
    %28 = vector.broadcast %26 : vector<1x20xf32> to vector<32x20xf32>
    %29 = arith.addf %27, %28 : vector<32x20xf32>
    %30 = math.tanh %29 : vector<32x20xf32>
    %c0_25 = arith.constant 0 : index
    %c0_26 = arith.constant 0 : index
    %31 = vector.load %arg17[%c0_25, %c0_26] : memref<1x20xf32, #tpu.memory_space<vmem>>, vector<1x20xf32>
    %c0_27 = arith.constant 0 : index
    %c0_28 = arith.constant 0 : index
    %32 = vector.load %arg18[%c0_27, %c0_28] : memref<1x1xf32, #tpu.memory_space<vmem>>, vector<1x1xf32>
    %33 = vector.broadcast %31 : vector<1x20xf32> to vector<32x20xf32>
    %34 = arith.mulf %30, %33 : vector<32x20xf32>
    %cst_29 = arith.constant dense<0.000000e+00> : vector<32xf32>
    %35 = vector.multi_reduction <add>, %34, %cst_29 [1] : vector<32x20xf32> to vector<32xf32>
    %36 = vector.shape_cast %35 : vector<32xf32> to vector<32x1xf32>
    %37 = vector.broadcast %32 : vector<1x1xf32> to vector<32x1xf32>
    %38 = arith.addf %36, %37 : vector<32x1xf32>
    %c0_30 = arith.constant 0 : index
    %c0_31 = arith.constant 0 : index
    %39 = vector.load %arg1[%c0_30, %c0_31] : memref<32x1xi32, #tpu.memory_space<vmem>>, vector<32x1xi32>
    %40 = tpu.iota {dimensions = array<i32: 1>} : vector<32x128xi32>
    %41 = vector.broadcast %39 : vector<32x1xi32> to vector<32x128xi32>
    %42 = arith.cmpi eq, %40, %41 : vector<32x128xi32>
    %43 = arith.extui %42 : vector<32x128xi1> to vector<32x128xi32>
    %44 = arith.sitofp %43 : vector<32x128xi32> to vector<32x128xf32>
    %45 = vector.broadcast %38 : vector<32x1xf32> to vector<32x128xf32>
    %46 = arith.mulf %44, %45 : vector<32x128xf32>
    %cst_32 = arith.constant dense<0.000000e+00> : vector<128xf32>
    %47 = vector.multi_reduction <add>, %46, %cst_32 [0] : vector<32x128xf32> to vector<128xf32>
    %48 = vector.shape_cast %47 : vector<128xf32> to vector<1x128xf32>
    %c0_33 = arith.constant 0 : index
    %c0_34 = arith.constant 0 : index
    %49 = vector.load %arg19[%c0_33, %c0_34] : memref<1x128xf32, #tpu.memory_space<vmem>>, vector<1x128xf32>
    tpu.vector_store %arg19[%c0_33, %c0_34], %48 {strides = array<i32>} : memref<1x128xf32, #tpu.memory_space<vmem>>, vector<1x128xf32>,
    %50 = vector.shape_cast %31 : vector<1x20xf32> to vector<1x20xf32>
    %51 = vector.broadcast %50 : vector<1x20xf32> to vector<32x20xf32>
    %c0_35 = arith.constant 0 : index
    %c0_36 = arith.constant 0 : index
    %52 = vector.load %arg15[%c0_35, %c0_36] : memref<20x20xf32, #tpu.memory_space<vmem>>, vector<20x20xf32>
    %53 = arith.mulf %30, %30 : vector<32x20xf32>
    %cst_37 = arith.constant 1.000000e+00 : f32
    %54 = vector.broadcast %cst_37 : f32 to vector<32x20xf32>
    %55 = arith.subf %54, %53 : vector<32x20xf32>
    %56 = arith.mulf %51, %55 : vector<32x20xf32>
    %cst_38 = arith.constant dense<0.000000e+00> : vector<32x20xf32>
    %57 = tpu.matmul %56, %52, %cst_38 {dimension_numbers = #tpu.dot_dimension_numbers<[1], [0], [0], [1], [0, 0, 1, 1], [], []>} : vector<32x20xf32>, vector<20x20xf32>, vector<32x20xf32> -> vector<32x20xf32>
    %c0_39 = arith.constant 0 : index
    %c0_40 = arith.constant 0 : index
    %58 = vector.load %arg12[%c0_39, %c0_40] : memref<20x20xf32, #tpu.memory_space<vmem>>, vector<20x20xf32>
    %59 = arith.mulf %24, %24 : vector<32x20xf32>
    %cst_41 = arith.constant 1.000000e+00 : f32
    %60 = vector.broadcast %cst_41 : f32 to vector<32x20xf32>
    %61 = arith.subf %60, %59 : vector<32x20xf32>
    %62 = arith.mulf %57, %61 : vector<32x20xf32>
    %cst_42 = arith.constant dense<0.000000e+00> : vector<32x20xf32>
    %63 = tpu.matmul %62, %58, %cst_42 {dimension_numbers = #tpu.dot_dimension_numbers<[1], [0], [0], [1], [0, 0, 1, 1], [], []>} : vector<32x20xf32>, vector<20x20xf32>, vector<32x20xf32> -> vector<32x20xf32>
    %c0_43 = arith.constant 0 : index
    %c0_44 = arith.constant 0 : index
    %64 = vector.load %arg9[%c0_43, %c0_44] : memref<20x20xf32, #tpu.memory_space<vmem>>, vector<20x20xf32>
    %65 = arith.mulf %18, %18 : vector<32x20xf32>
    %cst_45 = arith.constant 1.000000e+00 : f32
    %66 = vector.broadcast %cst_45 : f32 to vector<32x20xf32>
    %67 = arith.subf %66, %65 : vector<32x20xf32>
    %68 = arith.mulf %63, %67 : vector<32x20xf32>
    %cst_46 = arith.constant dense<0.000000e+00> : vector<32x20xf32>
    %69 = tpu.matmul %68, %64, %cst_46 {dimension_numbers = #tpu.dot_dimension_numbers<[1], [0], [0], [1], [0, 0, 1, 1], [], []>} : vector<32x20xf32>, vector<20x20xf32>, vector<32x20xf32> -> vector<32x20xf32>
    %c0_47 = arith.constant 0 : index
    %c0_48 = arith.constant 0 : index
    %70 = vector.load %arg6[%c0_47, %c0_48] : memref<20x20xf32, #tpu.memory_space<vmem>>, vector<20x20xf32>
    %71 = arith.mulf %12, %12 : vector<32x20xf32>
    %cst_49 = arith.constant 1.000000e+00 : f32
    %72 = vector.broadcast %cst_49 : f32 to vector<32x20xf32>
    %73 = arith.subf %72, %71 : vector<32x20xf32>
    %74 = arith.mulf %69, %73 : vector<32x20xf32>
    %cst_50 = arith.constant dense<0.000000e+00> : vector<32x20xf32>
    %75 = tpu.matmul %74, %70, %cst_50 {dimension_numbers = #tpu.dot_dimension_numbers<[1], [0], [0], [1], [0, 0, 1, 1], [], []>} : vector<32x20xf32>, vector<20x20xf32>, vector<32x20xf32> -> vector<32x20xf32>
    %c0_51 = arith.constant 0 : index
    %c0_52 = arith.constant 0 : index
    %76 = vector.load %arg3[%c0_51, %c0_52] : memref<20x32xf32, #tpu.memory_space<vmem>>, vector<20x32xf32>
    %77 = arith.mulf %6, %6 : vector<32x20xf32>
    %cst_53 = arith.constant 1.000000e+00 : f32
    %78 = vector.broadcast %cst_53 : f32 to vector<32x20xf32>
    %79 = arith.subf %78, %77 : vector<32x20xf32>
    %80 = arith.mulf %75, %79 : vector<32x20xf32>
    %cst_54 = arith.constant dense<0.000000e+00> : vector<32x32xf32>
    %81 = tpu.matmul %80, %76, %cst_54 {dimension_numbers = #tpu.dot_dimension_numbers<[1], [0], [0], [1], [0, 0, 1, 1], [], []>} : vector<32x20xf32>, vector<20x32xf32>, vector<32x32xf32> -> vector<32x32xf32>
    %cst_55 = arith.constant 0.000000e+00 : f32
    %82 = vector.broadcast %cst_55 : f32 to vector<32x32xf32>
    %83 = arith.subf %82, %81 : vector<32x32xf32>
    %c0_56 = arith.constant 0 : index
    %c0_57 = arith.constant 0 : index
    %84 = vector.load %arg20[%c0_56, %c0_57] : memref<32x32xf32, #tpu.memory_space<vmem>>, vector<32x32xf32>
    tpu.vector_store %arg20[%c0_56, %c0_57], %83 {strides = array<i32>} : memref<32x32xf32, #tpu.memory_space<vmem>>, vector<32x32xf32>,
    return
  }
}

</mosaic_0001>

<llo_original>
// kernel: tpu_custom_call.1
$region0: #{tpu_custom_call.1}
  #allocation0 [shape = 'u32[]', space=smem, size = 0x4, offset = 0x4, fixed_abs, tag = 'smem constant byte address 0x4 - core index']
  #allocation1 [shape = 'u32[144,128]{1,0:T(1,128)}', space=vmem, size = 0x12000, scoped, tag = 'internal scratch']
  #allocation2 [shape = 'f32[1,1]{1,0:T(1,128)S(1)}', space=vmem, size = 0x200, scoped, tag = 'scoped memory for tpu_custom_call.1']
  %s0 = inlined_call_operand.vmem [shape: f32[32,32], index: 0, kind: input, shape index: {}]
  %s1 = inlined_call_operand.vmem [shape: s32[32,1], index: 1, kind: input, shape index: {}]
  %s2 = inlined_call_operand.vmem [shape: f32[32,20], index: 2, kind: input, shape index: {}]
  %s3 = inlined_call_operand.vmem [shape: f32[20,32], index: 3, kind: input, shape index: {}]
  %s4 = inlined_call_operand.vmem [shape: f32[1,20], index: 4, kind: input, shape index: {}]
  %s5 = inlined_call_operand.hbm [shape: f32[20,20], index: 5, kind: input, shape index: {}]
  %s6 = inlined_call_operand.hbm [shape: f32[20,20], index: 6, kind: input, shape index: {}]
  %s7 = inlined_call_operand.hbm [shape: f32[1,20], index: 7, kind: input, shape index: {}]
  %s8 = inlined_call_operand.vmem [shape: f32[20,20], index: 8, kind: input, shape index: {}]
  %s9 = inlined_call_operand.hbm [shape: f32[20,20], index: 9, kind: input, shape index: {}]
  %s10 = inlined_call_operand.vmem [shape: f32[1,20], index: 10, kind: input, shape index: {}]
  %s11 = inlined_call_operand.hbm [shape: f32[20,20], index: 11, kind: input, shape index: {}]
  %s12 = inlined_call_operand.hbm [shape: f32[20,20], index: 12, kind: input, shape index: {}]
  %s13 = inlined_call_operand.vmem [shape: f32[1,20], index: 13, kind: input, shape index: {}]
  %s14 = inlined_call_operand.hbm [shape: f32[20,20], index: 14, kind: input, shape index: {}]
  %s15 = inlined_call_operand.hbm [shape: f32[20,20], index: 15, kind: input, shape index: {}]
  %s16 = inlined_call_operand.vmem [shape: f32[1,20], index: 16, kind: input, shape index: {}]
  %s17 = inlined_call_operand.vmem [shape: f32[1,20], index: 17, kind: input, shape index: {}]
  %s18 = inlined_call_operand.<no memory space> [shape: f32[1,1], index: 18, kind: input, shape index: {}]
  %s19 = inlined_call_operand.hbm [shape: f32[1,128], index: 19, kind: output, shape index: {0}]
  %s20 = inlined_call_operand.hbm [shape: f32[32,32], index: 20, kind: output, shape index: {1}]
  %21 = xla_tuple %s19, %s20
  %s22 = sld [smem:[#allocation0]]
  $region126: #{tpu_custom_call.1} parent=0
    _
  %s24 = ssub.s32 1, %s22
  %s25 = scalar_select 0, %s24, %s22
  %v26 = vstv %s18
  %27 = vst [vmem:[#allocation2] sm:$0x1] %v26
  $region1: #{tpu_custom_call.1} parent=0
    #allocation3 [shape = 'u8[12288]{0}', space=vmem, size = 0x3000, scoped, tag = 'input window, operand 5, single buffered']
    #allocation4 [shape = 's32[1]{0}', space=sflag, size = 0x4, scoped, tag = 'scoped memory for tpu_custom_call.1']
    #allocation5 [shape = 's32[1]{0}', space=sflag, size = 0x4, scoped, tag = 'scoped memory for tpu_custom_call.1']
    #allocation6 [shape = 'u8[12288]{0}', space=vmem, size = 0x3000, scoped, tag = 'input window, operand 6, single buffered']
    #allocation7 [shape = 's32[1]{0}', space=sflag, size = 0x4, scoped, tag = 'scoped memory for tpu_custom_call.1']
    #allocation8 [shape = 'u8[512]{0}', space=vmem, size = 0x400, scoped, tag = 'input window, operand 7, single buffered']
    #allocation9 [shape = 'u8[12288]{0}', space=vmem, size = 0x3000, scoped, tag = 'input window, operand 9, single buffered']
    #allocation10 [shape = 's32[1]{0}', space=sflag, size = 0x4, scoped, tag = 'scoped memory for tpu_custom_call.1']
    #allocation11 [shape = 'u8[12288]{0}', space=vmem, size = 0x3000, scoped, tag = 'input window, operand 11, single buffered']
    #allocation12 [shape = 'u8[12288]{0}', space=vmem, size = 0x3000, scoped, tag = 'input window, operand 12, single buffered']
    #allocation13 [shape = 's32[1]{0}', space=sflag, size = 0x4, scoped, tag = 'scoped memory for tpu_custom_call.1']
    #allocation14 [shape = 'u8[12288]{0}', space=vmem, size = 0x3000, scoped, tag = 'input window, operand 14, single buffered']
    #allocation15 [shape = 'u8[12288]{0}', space=vmem, size = 0x3000, scoped, tag = 'input window, operand 15, single buffered']
    #allocation16 [shape = 's32[1]{0}', space=sflag, size = 0x4, scoped, tag = 'scoped memory for tpu_custom_call.1']
    #allocation17 [shape = 'u8[512]{0}', space=vmem, size = 0x400, scoped, tag = 'output window, operand 0, single buffered']
    #allocation18 [shape = 'u8[16384]{0}', space=vmem, size = 0x4000, scoped, tag = 'output window, operand 1, single buffered']
    #allocation19 [shape = 's32[1]{0}', space=sflag, size = 0x4, scoped, tag = 'scoped memory for tpu_custom_call.1']
    %28 = vsyncpa [#allocation4], 0
    %29 = vsyncpa [#allocation7], 0
    %30 = vsyncpa [#allocation10], 0
    %31 = vsyncpa [#allocation13], 0
    %32 = vsyncpa [#allocation16], 0
    %33 = vsyncpa [#allocation5], 0
    %34 = vsyncpa [#allocation19], 0
    // Predicated region
    $region2: #{tpu_custom_call.1} parent=1 // pred_check
      _
    $region3: #{tpu_custom_call.1} parent=1 // pred_check_branch
      %36 = sbr.rel (0) target = $region5
    $region4: #{tpu_custom_call.1} parent=1 // pred_region
      _
    $region5: #{tpu_custom_call.1} parent=1 // pred_fallthru
      _
    // Predicated region
    $region6: #{tpu_custom_call.1} parent=1 // pred_check
      _
    $region7: #{tpu_custom_call.1} parent=1 // pred_check_branch
      %38 = sbr.rel (0) target = $region9
    $region8: #{tpu_custom_call.1} parent=1 // pred_region
      _
    $region9: #{tpu_custom_call.1} parent=1 // pred_fallthru
      _
    // Predicated region
    $region10: #{tpu_custom_call.1} parent=1 // pred_check
      _
    $region11: #{tpu_custom_call.1} parent=1 // pred_check_branch
      %40 = sbr.rel (0) target = $region13
    $region12: #{tpu_custom_call.1} parent=1 // pred_region
      _
    $region13: #{tpu_custom_call.1} parent=1 // pred_fallthru
      _
    // Predicated region
    $region14: #{tpu_custom_call.1} parent=1 // pred_check
      _
    $region15: #{tpu_custom_call.1} parent=1 // pred_check_branch
      %42 = sbr.rel (0) target = $region17
    $region16: #{tpu_custom_call.1} parent=1 // pred_region
      _
    $region17: #{tpu_custom_call.1} parent=1 // pred_fallthru
      _
    // Predicated region
    $region18: #{tpu_custom_call.1} parent=1 // pred_check
      _
    $region19: #{tpu_custom_call.1} parent=1 // pred_check_branch
      %44 = sbr.rel (0) target = $region21
    $region20: #{tpu_custom_call.1} parent=1 // pred_region
      _
    $region21: #{tpu_custom_call.1} parent=1 // pred_fallthru
      _
    // Predicated region
    $region22: #{tpu_custom_call.1} parent=1 // pred_check
      _
    $region23: #{tpu_custom_call.1} parent=1 // pred_check_branch
      %46 = sbr.rel (0) target = $region25
    $region24: #{tpu_custom_call.1} parent=1 // pred_region
      %s48 = ssub.s32 384, 384
      %49 = vsyncadd [#allocation4], %s48
      %s50 = sshll.u32 [#allocation3], 4
      %s51 = int_to_ptr.vmem [resolvable:$true] %s50
      %56 = dma.hbm_to_vmem [thread:$0]  %s5, 384, %s51, [#allocation4], 128, 128, 8
    $region25: #{tpu_custom_call.1} parent=1 // pred_fallthru
      _
    // Predicated region
    $region26: #{tpu_custom_call.1} parent=1 // pred_check
      _
    $region27: #{tpu_custom_call.1} parent=1 // pred_check_branch
      %58 = sbr.rel (0) target = $region29
    $region28: #{tpu_custom_call.1} parent=1 // pred_region
      %s60 = ssub.s32 384, 384
      %61 = vsyncadd [#allocation7], %s60
      %s62 = sshll.u32 [#allocation6], 4
      %s63 = int_to_ptr.vmem [resolvable:$true] %s62
      %68 = dma.hbm_to_vmem [thread:$0]  %s6, 384, %s63, [#allocation7], 128, 128, 8
    $region29: #{tpu_custom_call.1} parent=1 // pred_fallthru
      _
    // Predicated region
    $region30: #{tpu_custom_call.1} parent=1 // pred_check
      _
    $region31: #{tpu_custom_call.1} parent=1 // pred_check_branch
      %70 = sbr.rel (0) target = $region33
    $region32: #{tpu_custom_call.1} parent=1 // pred_region
      %s72 = ssub.s32 16, 16
      %73 = vsyncadd [#allocation7], %s72
      %s75 = sshll.u32 [#allocation8], 4
      %s76 = int_to_ptr.vmem [resolvable:$true] %s75
      %78 = dma.hbm_to_vmem [thread:$0]  %s7, 16, %s76, [#allocation7]
    $region33: #{tpu_custom_call.1} parent=1 // pred_fallthru
      _
    // Predicated region
    $region34: #{tpu_custom_call.1} parent=1 // pred_check
      _
    $region35: #{tpu_custom_call.1} parent=1 // pred_check_branch
      %80 = sbr.rel (0) target = $region37
    $region36: #{tpu_custom_call.1} parent=1 // pred_region
      _
    $region37: #{tpu_custom_call.1} parent=1 // pred_fallthru
      _
    // Predicated region
    $region38: #{tpu_custom_call.1} parent=1 // pred_check
      _
    $region39: #{tpu_custom_call.1} parent=1 // pred_check_branch
      %82 = sbr.rel (0) target = $region41
    $region40: #{tpu_custom_call.1} parent=1 // pred_region
      %s84 = ssub.s32 384, 384
      %85 = vsyncadd [#allocation10], %s84
      %s86 = sshll.u32 [#allocation9], 4
      %s87 = int_to_ptr.vmem [resolvable:$true] %s86
      %92 = dma.hbm_to_vmem [thread:$0]  %s9, 384, %s87, [#allocation10], 128, 128, 8
    $region41: #{tpu_custom_call.1} parent=1 // pred_fallthru
      _
    // Predicated region
    $region42: #{tpu_custom_call.1} parent=1 // pred_check
      _
    $region43: #{tpu_custom_call.1} parent=1 // pred_check_branch
      %94 = sbr.rel (0) target = $region45
    $region44: #{tpu_custom_call.1} parent=1 // pred_region
      _
    $region45: #{tpu_custom_call.1} parent=1 // pred_fallthru
      _
    // Predicated region
    $region46: #{tpu_custom_call.1} parent=1 // pred_check
      _
    $region47: #{tpu_custom_call.1} parent=1 // pred_check_branch
      %96 = sbr.rel (0) target = $region49
    $region48: #{tpu_custom_call.1} parent=1 // pred_region
      %s98 = ssub.s32 384, 384
      %99 = vsyncadd [#allocation10], %s98
      %s100 = sshll.u32 [#allocation11], 4
      %s101 = int_to_ptr.vmem [resolvable:$true] %s100
      %106 = dma.hbm_to_vmem [thread:$0]  %s11, 384, %s101, [#allocation10], 128, 128, 8
    $region49: #{tpu_custom_call.1} parent=1 // pred_fallthru
      _
    // Predicated region
    $region50: #{tpu_custom_call.1} parent=1 // pred_check
      _
    $region51: #{tpu_custom_call.1} parent=1 // pred_check_branch
      %108 = sbr.rel (0) target = $region53
    $region52: #{tpu_custom_call.1} parent=1 // pred_region
      %s110 = ssub.s32 384, 384
      %111 = vsyncadd [#allocation13], %s110
      %s112 = sshll.u32 [#allocation12], 4
      %s113 = int_to_ptr.vmem [resolvable:$true] %s112
      %118 = dma.hbm_to_vmem [thread:$0]  %s12, 384, %s113, [#allocation13], 128, 128, 8
    $region53: #{tpu_custom_call.1} parent=1 // pred_fallthru
      _
    // Predicated region
    $region54: #{tpu_custom_call.1} parent=1 // pred_check
      _
    $region55: #{tpu_custom_call.1} parent=1 // pred_check_branch
      %120 = sbr.rel (0) target = $region57
    $region56: #{tpu_custom_call.1} parent=1 // pred_region
      _
    $region57: #{tpu_custom_call.1} parent=1 // pred_fallthru
      _
    // Predicated region
    $region58: #{tpu_custom_call.1} parent=1 // pred_check
      _
    $region59: #{tpu_custom_call.1} parent=1 // pred_check_branch
      %122 = sbr.rel (0) target = $region61
    $region60: #{tpu_custom_call.1} parent=1 // pred_region
      %s124 = ssub.s32 384, 384
      %125 = vsyncadd [#allocation13], %s124
      %s126 = sshll.u32 [#allocation14], 4
      %s127 = int_to_ptr.vmem [resolvable:$true] %s126
      %132 = dma.hbm_to_vmem [thread:$0]  %s14, 384, %s127, [#allocation13], 128, 128, 8
    $region61: #{tpu_custom_call.1} parent=1 // pred_fallthru
      _
    // Predicated region
    $region62: #{tpu_custom_call.1} parent=1 // pred_check
      _
    $region63: #{tpu_custom_call.1} parent=1 // pred_check_branch
      %134 = sbr.rel (0) target = $region65
    $region64: #{tpu_custom_call.1} parent=1 // pred_region
      %s136 = ssub.s32 384, 384
      %137 = vsyncadd [#allocation16], %s136
      %s138 = sshll.u32 [#allocation15], 4
      %s139 = int_to_ptr.vmem [resolvable:$true] %s138
      %144 = dma.hbm_to_vmem [thread:$0]  %s15, 384, %s139, [#allocation16], 128, 128, 8
    $region65: #{tpu_custom_call.1} parent=1 // pred_fallthru
      _
    // Predicated region
    $region66: #{tpu_custom_call.1} parent=1 // pred_check
      _
    $region67: #{tpu_custom_call.1} parent=1 // pred_check_branch
      %146 = sbr.rel (0) target = $region69
    $region68: #{tpu_custom_call.1} parent=1 // pred_region
      _
    $region69: #{tpu_custom_call.1} parent=1 // pred_fallthru
      _
    // Predicated region
    $region70: #{tpu_custom_call.1} parent=1 // pred_check
      _
    $region71: #{tpu_custom_call.1} parent=1 // pred_check_branch
      %148 = sbr.rel (0) target = $region73
    $region72: #{tpu_custom_call.1} parent=1 // pred_region
      _
    $region73: #{tpu_custom_call.1} parent=1 // pred_fallthru
      _
    // Predicated region
    $region74: #{tpu_custom_call.1} parent=1 // pred_check
      _
    $region75: #{tpu_custom_call.1} parent=1 // pred_check_branch
      %150 = sbr.rel (0) target = $region77
    $region76: #{tpu_custom_call.1} parent=1 // pred_region
      _
    $region77: #{tpu_custom_call.1} parent=1 // pred_fallthru
      _
    // Predicated region
    $region78: #{tpu_custom_call.1} parent=1 // pred_check
      _
    $region79: #{tpu_custom_call.1} parent=1 // pred_check_branch
      %152 = sbr.rel (0) target = $region81
    $region80: #{tpu_custom_call.1} parent=1 // pred_region
      %153 = dma.done [#allocation4], 384
    $region81: #{tpu_custom_call.1} parent=1 // pred_fallthru
      _
    // Predicated region
    $region82: #{tpu_custom_call.1} parent=1 // pred_check
      _
    $region83: #{tpu_custom_call.1} parent=1 // pred_check_branch
      %155 = sbr.rel (0) target = $region85
    $region84: #{tpu_custom_call.1} parent=1 // pred_region
      %156 = dma.done [#allocation7], 384
    $region85: #{tpu_custom_call.1} parent=1 // pred_fallthru
      _
    // Predicated region
    $region86: #{tpu_custom_call.1} parent=1 // pred_check
      _
    $region87: #{tpu_custom_call.1} parent=1 // pred_check_branch
      %158 = sbr.rel (0) target = $region89
    $region88: #{tpu_custom_call.1} parent=1 // pred_region
      %159 = dma.done [#allocation7], 16
    $region89: #{tpu_custom_call.1} parent=1 // pred_fallthru
      _
    // Predicated region
    $region90: #{tpu_custom_call.1} parent=1 // pred_check
      _
    $region91: #{tpu_custom_call.1} parent=1 // pred_check_branch
      %161 = sbr.rel (0) target = $region93
    $region92: #{tpu_custom_call.1} parent=1 // pred_region
      %162 = dma.done [#allocation10], 384
    $region93: #{tpu_custom_call.1} parent=1 // pred_fallthru
      _
    // Predicated region
    $region94: #{tpu_custom_call.1} parent=1 // pred_check
      _
    $region95: #{tpu_custom_call.1} parent=1 // pred_check_branch
      %164 = sbr.rel (0) target = $region97
    $region96: #{tpu_custom_call.1} parent=1 // pred_region
      %165 = dma.done [#allocation10], 384
    $region97: #{tpu_custom_call.1} parent=1 // pred_fallthru
      _
    // Predicated region
    $region98: #{tpu_custom_call.1} parent=1 // pred_check
      _
    $region99: #{tpu_custom_call.1} parent=1 // pred_check_branch
      %167 = sbr.rel (0) target = $region101
    $region100: #{tpu_custom_call.1} parent=1 // pred_region
      %168 = dma.done [#allocation13], 384
    $region101: #{tpu_custom_call.1} parent=1 // pred_fallthru
      _
    // Predicated region
    $region102: #{tpu_custom_call.1} parent=1 // pred_check
      _
    $region103: #{tpu_custom_call.1} parent=1 // pred_check_branch
      %170 = sbr.rel (0) target = $region105
    $region104: #{tpu_custom_call.1} parent=1 // pred_region
      %171 = dma.done [#allocation13], 384
    $region105: #{tpu_custom_call.1} parent=1 // pred_fallthru
      _
    // Predicated region
    $region106: #{tpu_custom_call.1} parent=1 // pred_check
      _
    $region107: #{tpu_custom_call.1} parent=1 // pred_check_branch
      %173 = sbr.rel (0) target = $region109
    $region108: #{tpu_custom_call.1} parent=1 // pred_region
      %174 = dma.done [#allocation16], 384
    $region109: #{tpu_custom_call.1} parent=1 // pred_fallthru
      _
    %v175 = vld [vmem:[%s0] sm:$0xff]
    %v176 = vld [vmem:[%s0 + $0x8] sm:$0xff]
    %v177 = vld [vmem:[%s0 + $0x10] sm:$0xff]
    %v178 = vld [vmem:[%s0 + $0x18] sm:$0xff]
    %v179 = vld [vmem:[%s2] sm:$0xff]
    %v180 = vld [vmem:[%s2 + $0x8] sm:$0xff]
    %v181 = vld [vmem:[%s2 + $0x10] sm:$0xff]
    %v182 = vld [vmem:[%s2 + $0x18] sm:$0xff]
    %v183 = vld [vmem:[%s4] sm:$0x1]
    %v185 = vlaneseq
    %v186 = vshrl.u32 %v185, 7
    %v187 = vsub.s32 0, %v186
    %v188 = vrot.slane %v183, %v187
    %vm190 = vcmask 261120
    %v192 = vsel %vm190, %v175, 0
    %v195 = vsel %vm190, %v176, 0
    %v198 = vsel %vm190, %v177, 0
    %v201 = vsel %vm190, %v178, 0
    %203 = vmatprep.subr.mxu0 0.0
    %204 = vmatpush1.msra.mxu0 0.0
    %205 = vmatprep.subr.mxu0 0.0
    %206 = vmatpush1.msra.mxu0 0.0
    %207 = vmatprep.subr.mxu0 0.0
    %208 = vmatpush1.msra.mxu0 0.0
    %209 = vmatprep.subr.mxu0 0.0
    %210 = vmatpush1.msra.mxu0 0.0
    %211 = vmatprep.subr.mxu0 0.0
    %212 = vmatpush1.msra.mxu0 0.0
    %213 = vmatprep.subr.mxu0 0.0
    %214 = vmatpush1.msra.mxu0 0.0
    %215 = vmatprep.subr.mxu0 0.0
    %216 = vmatpush1.msra.mxu0 0.0
    %217 = vmatprep.subr.mxu0 0.0
    %218 = vmatpush1.msra.mxu0 0.0
    %219 = vmatprep.subr.mxu0 0.0
    %220 = vmatpush1.msra.mxu0 0.0
    %221 = vmatprep.subr.mxu0 0.0
    %222 = vmatpush1.msra.mxu0 0.0
    %223 = vmatprep.subr.mxu0 0.0
    %224 = vmatpush1.msra.mxu0 0.0
    %225 = vmatprep.subr.mxu0 0.0
    %226 = vmatpush1.msra.mxu0 0.0
    %227 = vmatprep.subr.mxu0 0.0
    %228 = vmatpush1.msra.mxu0 %v182
    %229 = vmatprep.subr.mxu0 0.0
    %230 = vmatpush1.msra.mxu0 %v181
    %231 = vmatprep.subr.mxu0 0.0
    %232 = vmatpush1.msra.mxu0 %v180
    %233 = vmatprep.subr.mxu0 0.0
    %234 = vmatpush1.msra.mxu0 %v179
    %235 = vmatprep.subr.mxu0 0.0
    %236 = vmatpush2.msra.mxu0 0.0
    %237 = vmatprep.subr.mxu0 0.0
    %238 = vmatpush2.msra.mxu0 0.0
    %239 = vmatprep.subr.mxu0 0.0
    %240 = vmatpush2.msra.mxu0 0.0
    %241 = vmatprep.subr.mxu0 0.0
    %242 = vmatpush2.msra.mxu0 0.0
    %243 = vmatprep.subr.mxu0 0.0
    %244 = vmatpush2.msra.mxu0 0.0
    %245 = vmatprep.subr.mxu0 0.0
    %246 = vmatpush2.msra.mxu0 0.0
    %247 = vmatprep.subr.mxu0 0.0
    %248 = vmatpush2.msra.mxu0 0.0
    %249 = vmatprep.subr.mxu0 0.0
    %250 = vmatpush2.msra.mxu0 0.0
    %251 = vmatprep.subr.mxu0 0.0
    %252 = vmatpush2.msra.mxu0 0.0
    %253 = vmatprep.subr.mxu0 0.0
    %254 = vmatpush2.msra.mxu0 0.0
    %255 = vmatprep.subr.mxu0 0.0
    %256 = vmatpush2.msra.mxu0 0.0
    %257 = vmatprep.subr.mxu0 0.0
    %258 = vmatpush2.msra.mxu0 0.0
    %259 = vmatprep.subr.mxu0 0.0
    %260 = vmatpush2.msra.mxu0 0.0
    %261 = vmatprep.subr.mxu0 0.0
    %262 = vmatpush2.msra.mxu0 0.0
    %263 = vmatprep.subr.mxu0 0.0
    %264 = vmatpush2.msra.mxu0 0.0
    %265 = vmatprep.subr.mxu0 0.0
    %266 = vmatpush2.msra.mxu0 0.0
    %267 = vmatprep.mubr.f32.mxu0 0.0
    %268 = vmatmul.mubr.f32.gmra.mxu0 %v192
    %v269 = vpop.f32.mrf.mxu0
    %v270 = vadd.f32 %v188, %v269
    %v271 = vpop.f32.mrf.mxu0
    %272 = vmatprep.mubr.f32.mxu0 0.0
    %273 = vmatmul.mubr.f32.gmra.mxu0 %v195
    %v274 = vpop.f32.mrf.mxu0
    %v275 = vadd.f32 %v188, %v274
    %v276 = vpop.f32.mrf.mxu0
    %277 = vmatprep.mubr.f32.mxu0 0.0
    %278 = vmatmul.mubr.f32.gmra.mxu0 %v198
    %v279 = vpop.f32.mrf.mxu0
    %v280 = vadd.f32 %v188, %v279
    %v281 = vpop.f32.mrf.mxu0
    %282 = vmatprep.mubr.f32.mxu0 0.0
    %283 = vmatmul.mubr.f32.gmra.mxu0 %v201
    %v284 = vpop.f32.mrf.mxu0
    %v285 = vadd.f32 %v188, %v284
    %v286 = vpop.f32.mrf.mxu0
    %287 = vdwg.mxu0
    %v288 = vtanh.pop %v270
    %v289 = vtanh.pop %v275
    %v290 = vtanh.pop %v280
    %v291 = vtanh.pop %v285
    %v292 = vld [vmem:[#allocation3] sm:$0xff]
    %v293 = vld [vmem:[#allocation3 + $0x8] sm:$0xff]
    %v294 = vld [vmem:[#allocation3 + $0x10] sm:$0xf]
    %v295 = vld [vmem:[#allocation8] sm:$0x1]
    %v297 = vlaneseq
    %v298 = vshrl.u32 %v297, 7
    %v299 = vsub.s32 0, %v298
    %v300 = vrot.slane %v295, %v299
    %vm302 = vcmask 162816
    %v304 = vsel %vm302, %v288, 0
    %v307 = vsel %vm302, %v289, 0
    %v310 = vsel %vm302, %v290, 0
    %v313 = vsel %vm302, %v291, 0
    %vm315 = vcmask 1043456
    %v317 = vsel %vm315, %v294, 0
    %319 = vmatprep.subr.mxu0 0.0
    %320 = vmatpush1.msra.mxu0 0.0
    %321 = vmatprep.subr.mxu0 0.0
    %322 = vmatpush1.msra.mxu0 0.0
    %323 = vmatprep.subr.mxu0 0.0
    %324 = vmatpush1.msra.mxu0 0.0
    %325 = vmatprep.subr.mxu0 0.0
    %326 = vmatpush1.msra.mxu0 0.0
    %327 = vmatprep.subr.mxu0 0.0
    %328 = vmatpush1.msra.mxu0 0.0
    %329 = vmatprep.subr.mxu0 0.0
    %330 = vmatpush1.msra.mxu0 0.0
    %331 = vmatprep.subr.mxu0 0.0
    %332 = vmatpush1.msra.mxu0 0.0
    %333 = vmatprep.subr.mxu0 0.0
    %334 = vmatpush1.msra.mxu0 0.0
    %335 = vmatprep.subr.mxu0 0.0
    %336 = vmatpush1.msra.mxu0 0.0
    %337 = vmatprep.subr.mxu0 0.0
    %338 = vmatpush1.msra.mxu0 0.0
    %339 = vmatprep.subr.mxu0 0.0
    %340 = vmatpush1.msra.mxu0 0.0
    %341 = vmatprep.subr.mxu0 0.0
    %342 = vmatpush1.msra.mxu0 0.0
    %343 = vmatprep.subr.mxu0 0.0
    %344 = vmatpush1.msra.mxu0 0.0
    %345 = vmatprep.subr.mxu0 0.0
    %346 = vmatpush1.msra.mxu0 %v317
    %347 = vmatprep.subr.mxu0 0.0
    %348 = vmatpush1.msra.mxu0 %v293
    %349 = vmatprep.subr.mxu0 0.0
    %350 = vmatpush1.msra.mxu0 %v292
    %351 = vmatprep.subr.mxu0 0.0
    %352 = vmatpush2.msra.mxu0 0.0
    %353 = vmatprep.subr.mxu0 0.0
    %354 = vmatpush2.msra.mxu0 0.0
    %355 = vmatprep.subr.mxu0 0.0
    %356 = vmatpush2.msra.mxu0 0.0
    %357 = vmatprep.subr.mxu0 0.0
    %358 = vmatpush2.msra.mxu0 0.0
    %359 = vmatprep.subr.mxu0 0.0
    %360 = vmatpush2.msra.mxu0 0.0
    %361 = vmatprep.subr.mxu0 0.0
    %362 = vmatpush2.msra.mxu0 0.0
    %363 = vmatprep.subr.mxu0 0.0
    %364 = vmatpush2.msra.mxu0 0.0
    %365 = vmatprep.subr.mxu0 0.0
    %366 = vmatpush2.msra.mxu0 0.0
    %367 = vmatprep.subr.mxu0 0.0
    %368 = vmatpush2.msra.mxu0 0.0
    %369 = vmatprep.subr.mxu0 0.0
    %370 = vmatpush2.msra.mxu0 0.0
    %371 = vmatprep.subr.mxu0 0.0
    %372 = vmatpush2.msra.mxu0 0.0
    %373 = vmatprep.subr.mxu0 0.0
    %374 = vmatpush2.msra.mxu0 0.0
    %375 = vmatprep.subr.mxu0 0.0
    %376 = vmatpush2.msra.mxu0 0.0
    %377 = vmatprep.subr.mxu0 0.0
    %378 = vmatpush2.msra.mxu0 0.0
    %379 = vmatprep.subr.mxu0 0.0
    %380 = vmatpush2.msra.mxu0 0.0
    %381 = vmatprep.subr.mxu0 0.0
    %382 = vmatpush2.msra.mxu0 0.0
    %383 = vmatprep.mubr.f32.mxu0 0.0
    %384 = vmatmul.mubr.f32.gmra.mxu0 %v304
    %v385 = vpop.f32.mrf.mxu0
    %v386 = vadd.f32 %v300, %v385
    %v387 = vpop.f32.mrf.mxu0
    %388 = vmatprep.mubr.f32.mxu0 0.0
    %389 = vmatmul.mubr.f32.gmra.mxu0 %v307
    %v390 = vpop.f32.mrf.mxu0
    %v391 = vadd.f32 %v300, %v390
    %v392 = vpop.f32.mrf.mxu0
    %393 = vmatprep.mubr.f32.mxu0 0.0
    %394 = vmatmul.mubr.f32.gmra.mxu0 %v310
    %v395 = vpop.f32.mrf.mxu0
    %v396 = vadd.f32 %v300, %v395
    %v397 = vpop.f32.mrf.mxu0
    %398 = vmatprep.mubr.f32.mxu0 0.0
    %399 = vmatmul.mubr.f32.gmra.mxu0 %v313
    %v400 = vpop.f32.mrf.mxu0
    %v401 = vadd.f32 %v300, %v400
    %v402 = vpop.f32.mrf.mxu0
    %403 = vdwg.mxu0
    %v404 = vtanh.pop %v386
    %v405 = vtanh.pop %v391
    %v406 = vtanh.pop %v396
    %v407 = vtanh.pop %v401
    %v408 = vld [vmem:[%s8] sm:$0xff]
    %v409 = vld [vmem:[%s8 + $0x8] sm:$0xff]
    %v410 = vld [vmem:[%s8 + $0x10] sm:$0xf]
    %v411 = vld [vmem:[%s10] sm:$0x1]
    %v413 = vlaneseq
    %v414 = vshrl.u32 %v413, 7
    %v415 = vsub.s32 0, %v414
    %v416 = vrot.slane %v411, %v415
    %v419 = vsel %vm302, %v404, 0
    %v422 = vsel %vm302, %v405, 0
    %v425 = vsel %vm302, %v406, 0
    %v428 = vsel %vm302, %v407, 0
    %v431 = vsel %vm315, %v410, 0
    %433 = vmatprep.subr.mxu0 0.0
    %434 = vmatpush1.msra.mxu0 0.0
    %435 = vmatprep.subr.mxu0 0.0
    %436 = vmatpush1.msra.mxu0 0.0
    %437 = vmatprep.subr.mxu0 0.0
    %438 = vmatpush1.msra.mxu0 0.0
    %439 = vmatprep.subr.mxu0 0.0
    %440 = vmatpush1.msra.mxu0 0.0
    %441 = vmatprep.subr.mxu0 0.0
    %442 = vmatpush1.msra.mxu0 0.0
    %443 = vmatprep.subr.mxu0 0.0
    %444 = vmatpush1.msra.mxu0 0.0
    %445 = vmatprep.subr.mxu0 0.0
    %446 = vmatpush1.msra.mxu0 0.0
    %447 = vmatprep.subr.mxu0 0.0
    %448 = vmatpush1.msra.mxu0 0.0
    %449 = vmatprep.subr.mxu0 0.0
    %450 = vmatpush1.msra.mxu0 0.0
    %451 = vmatprep.subr.mxu0 0.0
    %452 = vmatpush1.msra.mxu0 0.0
    %453 = vmatprep.subr.mxu0 0.0
    %454 = vmatpush1.msra.mxu0 0.0
    %455 = vmatprep.subr.mxu0 0.0
    %456 = vmatpush1.msra.mxu0 0.0
    %457 = vmatprep.subr.mxu0 0.0
    %458 = vmatpush1.msra.mxu0 0.0
    %459 = vmatprep.subr.mxu0 0.0
    %460 = vmatpush1.msra.mxu0 %v431
    %461 = vmatprep.subr.mxu0 0.0
    %462 = vmatpush1.msra.mxu0 %v409
    %463 = vmatprep.subr.mxu0 0.0
    %464 = vmatpush1.msra.mxu0 %v408
    %465 = vmatprep.subr.mxu0 0.0
    %466 = vmatpush2.msra.mxu0 0.0
    %467 = vmatprep.subr.mxu0 0.0
    %468 = vmatpush2.msra.mxu0 0.0
    %469 = vmatprep.subr.mxu0 0.0
    %470 = vmatpush2.msra.mxu0 0.0
    %471 = vmatprep.subr.mxu0 0.0
    %472 = vmatpush2.msra.mxu0 0.0
    %473 = vmatprep.subr.mxu0 0.0
    %474 = vmatpush2.msra.mxu0 0.0
    %475 = vmatprep.subr.mxu0 0.0
    %476 = vmatpush2.msra.mxu0 0.0
    %477 = vmatprep.subr.mxu0 0.0
    %478 = vmatpush2.msra.mxu0 0.0
    %479 = vmatprep.subr.mxu0 0.0
    %480 = vmatpush2.msra.mxu0 0.0
    %481 = vmatprep.subr.mxu0 0.0
    %482 = vmatpush2.msra.mxu0 0.0
    %483 = vmatprep.subr.mxu0 0.0
    %484 = vmatpush2.msra.mxu0 0.0
    %485 = vmatprep.subr.mxu0 0.0
    %486 = vmatpush2.msra.mxu0 0.0
    %487 = vmatprep.subr.mxu0 0.0
    %488 = vmatpush2.msra.mxu0 0.0
    %489 = vmatprep.subr.mxu0 0.0
    %490 = vmatpush2.msra.mxu0 0.0
    %491 = vmatprep.subr.mxu0 0.0
    %492 = vmatpush2.msra.mxu0 0.0
    %493 = vmatprep.subr.mxu0 0.0
    %494 = vmatpush2.msra.mxu0 0.0
    %495 = vmatprep.subr.mxu0 0.0
    %496 = vmatpush2.msra.mxu0 0.0
    %497 = vmatprep.mubr.f32.mxu0 0.0
    %498 = vmatmul.mubr.f32.gmra.mxu0 %v419
    %v499 = vpop.f32.mrf.mxu0
    %v500 = vadd.f32 %v416, %v499
    %v501 = vpop.f32.mrf.mxu0
    %502 = vmatprep.mubr.f32.mxu0 0.0
    %503 = vmatmul.mubr.f32.gmra.mxu0 %v422
    %v504 = vpop.f32.mrf.mxu0
    %v505 = vadd.f32 %v416, %v504
    %v506 = vpop.f32.mrf.mxu0
    %507 = vmatprep.mubr.f32.mxu0 0.0
    %508 = vmatmul.mubr.f32.gmra.mxu0 %v425
    %v509 = vpop.f32.mrf.mxu0
    %v510 = vadd.f32 %v416, %v509
    %v511 = vpop.f32.mrf.mxu0
    %512 = vmatprep.mubr.f32.mxu0 0.0
    %513 = vmatmul.mubr.f32.gmra.mxu0 %v428
    %v514 = vpop.f32.mrf.mxu0
    %v515 = vadd.f32 %v416, %v514
    %v516 = vpop.f32.mrf.mxu0
    %517 = vdwg.mxu0
    %v518 = vtanh.pop %v500
    %v519 = vtanh.pop %v505
    %v520 = vtanh.pop %v510
    %v521 = vtanh.pop %v515
    %v522 = vld [vmem:[#allocation11] sm:$0xff]
    %v523 = vld [vmem:[#allocation11 + $0x8] sm:$0xff]
    %v524 = vld [vmem:[#allocation11 + $0x10] sm:$0xf]
    %v525 = vld [vmem:[%s13] sm:$0x1]
    %v527 = vlaneseq
    %v528 = vshrl.u32 %v527, 7
    %v529 = vsub.s32 0, %v528
    %v530 = vrot.slane %v525, %v529
    %v533 = vsel %vm302, %v518, 0
    %v536 = vsel %vm302, %v519, 0
    %v539 = vsel %vm302, %v520, 0
    %v542 = vsel %vm302, %v521, 0
    %v545 = vsel %vm315, %v524, 0
    %547 = vmatprep.subr.mxu0 0.0
    %548 = vmatpush1.msra.mxu0 0.0
    %549 = vmatprep.subr.mxu0 0.0
    %550 = vmatpush1.msra.mxu0 0.0
    %551 = vmatprep.subr.mxu0 0.0
    %552 = vmatpush1.msra.mxu0 0.0
    %553 = vmatprep.subr.mxu0 0.0
    %554 = vmatpush1.msra.mxu0 0.0
    %555 = vmatprep.subr.mxu0 0.0
    %556 = vmatpush1.msra.mxu0 0.0
    %557 = vmatprep.subr.mxu0 0.0
    %558 = vmatpush1.msra.mxu0 0.0
    %559 = vmatprep.subr.mxu0 0.0
    %560 = vmatpush1.msra.mxu0 0.0
    %561 = vmatprep.subr.mxu0 0.0
    %562 = vmatpush1.msra.mxu0 0.0
    %563 = vmatprep.subr.mxu0 0.0
    %564 = vmatpush1.msra.mxu0 0.0
    %565 = vmatprep.subr.mxu0 0.0
    %566 = vmatpush1.msra.mxu0 0.0
    %567 = vmatprep.subr.mxu0 0.0
    %568 = vmatpush1.msra.mxu0 0.0
    %569 = vmatprep.subr.mxu0 0.0
    %570 = vmatpush1.msra.mxu0 0.0
    %571 = vmatprep.subr.mxu0 0.0
    %572 = vmatpush1.msra.mxu0 0.0
    %573 = vmatprep.subr.mxu0 0.0
    %574 = vmatpush1.msra.mxu0 %v545
    %575 = vmatprep.subr.mxu0 0.0
    %576 = vmatpush1.msra.mxu0 %v523
    %577 = vmatprep.subr.mxu0 0.0
    %578 = vmatpush1.msra.mxu0 %v522
    %579 = vmatprep.subr.mxu0 0.0
    %580 = vmatpush2.msra.mxu0 0.0
    %581 = vmatprep.subr.mxu0 0.0
    %582 = vmatpush2.msra.mxu0 0.0
    %583 = vmatprep.subr.mxu0 0.0
    %584 = vmatpush2.msra.mxu0 0.0
    %585 = vmatprep.subr.mxu0 0.0
    %586 = vmatpush2.msra.mxu0 0.0
    %587 = vmatprep.subr.mxu0 0.0
    %588 = vmatpush2.msra.mxu0 0.0
    %589 = vmatprep.subr.mxu0 0.0
    %590 = vmatpush2.msra.mxu0 0.0
    %591 = vmatprep.subr.mxu0 0.0
    %592 = vmatpush2.msra.mxu0 0.0
    %593 = vmatprep.subr.mxu0 0.0
    %594 = vmatpush2.msra.mxu0 0.0
    %595 = vmatprep.subr.mxu0 0.0
    %596 = vmatpush2.msra.mxu0 0.0
    %597 = vmatprep.subr.mxu0 0.0
    %598 = vmatpush2.msra.mxu0 0.0
    %599 = vmatprep.subr.mxu0 0.0
    %600 = vmatpush2.msra.mxu0 0.0
    %601 = vmatprep.subr.mxu0 0.0
    %602 = vmatpush2.msra.mxu0 0.0
    %603 = vmatprep.subr.mxu0 0.0
    %604 = vmatpush2.msra.mxu0 0.0
    %605 = vmatprep.subr.mxu0 0.0
    %606 = vmatpush2.msra.mxu0 0.0
    %607 = vmatprep.subr.mxu0 0.0
    %608 = vmatpush2.msra.mxu0 0.0
    %609 = vmatprep.subr.mxu0 0.0
    %610 = vmatpush2.msra.mxu0 0.0
    %611 = vmatprep.mubr.f32.mxu0 0.0
    %612 = vmatmul.mubr.f32.gmra.mxu0 %v533
    %v613 = vpop.f32.mrf.mxu0
    %v614 = vadd.f32 %v530, %v613
    %v615 = vpop.f32.mrf.mxu0
    %616 = vmatprep.mubr.f32.mxu0 0.0
    %617 = vmatmul.mubr.f32.gmra.mxu0 %v536
    %v618 = vpop.f32.mrf.mxu0
    %v619 = vadd.f32 %v530, %v618
    %v620 = vpop.f32.mrf.mxu0
    %621 = vmatprep.mubr.f32.mxu0 0.0
    %622 = vmatmul.mubr.f32.gmra.mxu0 %v539
    %v623 = vpop.f32.mrf.mxu0
    %v624 = vadd.f32 %v530, %v623
    %v625 = vpop.f32.mrf.mxu0
    %626 = vmatprep.mubr.f32.mxu0 0.0
    %627 = vmatmul.mubr.f32.gmra.mxu0 %v542
    %v628 = vpop.f32.mrf.mxu0
    %v629 = vadd.f32 %v530, %v628
    %v630 = vpop.f32.mrf.mxu0
    %631 = vdwg.mxu0
    %v632 = vtanh.pop %v614
    %v633 = vtanh.pop %v619
    %v634 = vtanh.pop %v624
    %v635 = vtanh.pop %v629
    %v636 = vld [vmem:[#allocation14] sm:$0xff]
    %v637 = vld [vmem:[#allocation14 + $0x8] sm:$0xff]
    %v638 = vld [vmem:[#allocation14 + $0x10] sm:$0xf]
    %v639 = vld [vmem:[%s16] sm:$0x1]
    %v641 = vlaneseq
    %v642 = vshrl.u32 %v641, 7
    %v643 = vsub.s32 0, %v642
    %v644 = vrot.slane %v639, %v643
    %v647 = vsel %vm302, %v632, 0
    %v650 = vsel %vm302, %v633, 0
    %v653 = vsel %vm302, %v634, 0
    %v656 = vsel %vm302, %v635, 0
    %v659 = vsel %vm315, %v638, 0
    %661 = vmatprep.subr.mxu0 0.0
    %662 = vmatpush1.msra.mxu0 0.0
    %663 = vmatprep.subr.mxu0 0.0
    %664 = vmatpush1.msra.mxu0 0.0
    %665 = vmatprep.subr.mxu0 0.0
    %666 = vmatpush1.msra.mxu0 0.0
    %667 = vmatprep.subr.mxu0 0.0
    %668 = vmatpush1.msra.mxu0 0.0
    %669 = vmatprep.subr.mxu0 0.0
    %670 = vmatpush1.msra.mxu0 0.0
    %671 = vmatprep.subr.mxu0 0.0
    %672 = vmatpush1.msra.mxu0 0.0
    %673 = vmatprep.subr.mxu0 0.0
    %674 = vmatpush1.msra.mxu0 0.0
    %675 = vmatprep.subr.mxu0 0.0
    %676 = vmatpush1.msra.mxu0 0.0
    %677 = vmatprep.subr.mxu0 0.0
    %678 = vmatpush1.msra.mxu0 0.0
    %679 = vmatprep.subr.mxu0 0.0
    %680 = vmatpush1.msra.mxu0 0.0
    %681 = vmatprep.subr.mxu0 0.0
    %682 = vmatpush1.msra.mxu0 0.0
    %683 = vmatprep.subr.mxu0 0.0
    %684 = vmatpush1.msra.mxu0 0.0
    %685 = vmatprep.subr.mxu0 0.0
    %686 = vmatpush1.msra.mxu0 0.0
    %687 = vmatprep.subr.mxu0 0.0
    %688 = vmatpush1.msra.mxu0 %v659
    %689 = vmatprep.subr.mxu0 0.0
    %690 = vmatpush1.msra.mxu0 %v637
    %691 = vmatprep.subr.mxu0 0.0
    %692 = vmatpush1.msra.mxu0 %v636
    %693 = vmatprep.subr.mxu0 0.0
    %694 = vmatpush2.msra.mxu0 0.0
    %695 = vmatprep.subr.mxu0 0.0
    %696 = vmatpush2.msra.mxu0 0.0
    %697 = vmatprep.subr.mxu0 0.0
    %698 = vmatpush2.msra.mxu0 0.0
    %699 = vmatprep.subr.mxu0 0.0
    %700 = vmatpush2.msra.mxu0 0.0
    %701 = vmatprep.subr.mxu0 0.0
    %702 = vmatpush2.msra.mxu0 0.0
    %703 = vmatprep.subr.mxu0 0.0
    %704 = vmatpush2.msra.mxu0 0.0
    %705 = vmatprep.subr.mxu0 0.0
    %706 = vmatpush2.msra.mxu0 0.0
    %707 = vmatprep.subr.mxu0 0.0
    %708 = vmatpush2.msra.mxu0 0.0
    %709 = vmatprep.subr.mxu0 0.0
    %710 = vmatpush2.msra.mxu0 0.0
    %711 = vmatprep.subr.mxu0 0.0
    %712 = vmatpush2.msra.mxu0 0.0
    %713 = vmatprep.subr.mxu0 0.0
    %714 = vmatpush2.msra.mxu0 0.0
    %715 = vmatprep.subr.mxu0 0.0
    %716 = vmatpush2.msra.mxu0 0.0
    %717 = vmatprep.subr.mxu0 0.0
    %718 = vmatpush2.msra.mxu0 0.0
    %719 = vmatprep.subr.mxu0 0.0
    %720 = vmatpush2.msra.mxu0 0.0
    %721 = vmatprep.subr.mxu0 0.0
    %722 = vmatpush2.msra.mxu0 0.0
    %723 = vmatprep.subr.mxu0 0.0
    %724 = vmatpush2.msra.mxu0 0.0
    %725 = vmatprep.mubr.f32.mxu0 0.0
    %726 = vmatmul.mubr.f32.gmra.mxu0 %v647
    %v727 = vpop.f32.mrf.mxu0
    %v728 = vadd.f32 %v644, %v727
    %v729 = vpop.f32.mrf.mxu0
    %730 = vmatprep.mubr.f32.mxu0 0.0
    %731 = vmatmul.mubr.f32.gmra.mxu0 %v650
    %v732 = vpop.f32.mrf.mxu0
    %v733 = vadd.f32 %v644, %v732
    %v734 = vpop.f32.mrf.mxu0
    %735 = vmatprep.mubr.f32.mxu0 0.0
    %736 = vmatmul.mubr.f32.gmra.mxu0 %v653
    %v737 = vpop.f32.mrf.mxu0
    %v738 = vadd.f32 %v644, %v737
    %v739 = vpop.f32.mrf.mxu0
    %740 = vmatprep.mubr.f32.mxu0 0.0
    %741 = vmatmul.mubr.f32.gmra.mxu0 %v656
    %v742 = vpop.f32.mrf.mxu0
    %v743 = vadd.f32 %v644, %v742
    %v744 = vpop.f32.mrf.mxu0
    %745 = vdwg.mxu0
    %v746 = vtanh.pop %v728
    %v747 = vtanh.pop %v733
    %v748 = vtanh.pop %v738
    %v749 = vtanh.pop %v743
    %v750 = vld [vmem:[%s17] sm:$0x1]
    %v751 = vld [vmem:[#allocation2] sm:$0x1]
    %v753 = vlaneseq
    %v754 = vshrl.u32 %v753, 7
    %v755 = vsub.s32 0, %v754
    %v756 = vrot.slane %v750, %v755
    %v758 = vmul.f32 %v746, %v756
    %v759 = vmul.f32 %v747, %v756
    %v760 = vmul.f32 %v748, %v756
    %v761 = vmul.f32 %v749, %v756
    %v762 = vsel %vm302, %v758, 0.0
    %763 = vadd.xlane.f32.xlu0 %v762
    %v764 = vpop.xlane.xlu0 %763
    %v765 = vsel %vm302, %v759, 0.0
    %766 = vadd.xlane.f32.xlu0 %v765
    %v767 = vpop.xlane.xlu0 %766
    %v768 = vsel %vm302, %v760, 0.0
    %769 = vadd.xlane.f32.xlu0 %v768
    %v770 = vpop.xlane.xlu0 %769
    %v771 = vsel %vm302, %v761, 0.0
    %772 = vadd.xlane.f32.xlu0 %v771
    %v773 = vpop.xlane.xlu0 %772
    %v775 = vlaneseq
    %v776 = vshrl.u32 %v775, 7
    %v777 = vsub.s32 0, %v776
    %v778 = vrot.slane %v751, %v777
    %v780 = vadd.f32 %v764, %v778
    %v781 = vadd.f32 %v767, %v778
    %v782 = vadd.f32 %v770, %v778
    %v783 = vadd.f32 %v773, %v778
    %v784 = vld [vmem:[%s1] sm:$0xff]
    %v785 = vld [vmem:[%s1 + $0x8] sm:$0xff]
    %v786 = vld [vmem:[%s1 + $0x10] sm:$0xff]
    %v787 = vld [vmem:[%s1 + $0x18] sm:$0xff]
    %v788 = vlaneseq
    %v789 = vand.u32 %v788, 127
    %790 = vset.pattern.permute.xlu0 0
    %791 = vperm.xlu0 %790, %v784
    %v792 = vpop.permute.xlu0 %791
    %793 = vset.pattern.permute.xlu0 0
    %794 = vperm.xlu0 %793, %v785
    %v795 = vpop.permute.xlu0 %794
    %796 = vset.pattern.permute.xlu0 0
    %797 = vperm.xlu0 %796, %v786
    %v798 = vpop.permute.xlu0 %797
    %799 = vset.pattern.permute.xlu0 0
    %800 = vperm.xlu0 %799, %v787
    %v801 = vpop.permute.xlu0 %800
    %vm802 = vcmp.eq.s32.totalorder %v789, %v792
    %vm803 = vcmp.eq.s32.totalorder %v789, %v795
    %vm804 = vcmp.eq.s32.totalorder %v789, %v798
    %vm805 = vcmp.eq.s32.totalorder %v789, %v801
    %v806 = vsel %vm802, 1, 0
    %v807 = vsel %vm803, 1, 0
    %v808 = vsel %vm804, 1, 0
    %v809 = vsel %vm805, 1, 0
    %v810 = vcvt.s32.f32 %v806
    %v811 = vcvt.s32.f32 %v807
    %v812 = vcvt.s32.f32 %v808
    %v813 = vcvt.s32.f32 %v809
    %815 = vset.pattern.permute.xlu0 0
    %816 = vperm.xlu0 %815, %v780
    %v817 = vpop.permute.xlu0 %816
    %820 = vset.pattern.permute.xlu0 0
    %821 = vperm.xlu0 %820, %v781
    %v822 = vpop.permute.xlu0 %821
    %825 = vset.pattern.permute.xlu0 0
    %826 = vperm.xlu0 %825, %v782
    %v827 = vpop.permute.xlu0 %826
    %830 = vset.pattern.permute.xlu0 0
    %831 = vperm.xlu0 %830, %v783
    %v832 = vpop.permute.xlu0 %831
    %v834 = vmul.f32 %v810, %v817
    %v835 = vmul.f32 %v811, %v822
    %v836 = vmul.f32 %v812, %v827
    %v837 = vmul.f32 %v813, %v832
    %v838 = vadd.f32 %v834, %v835
    %v839 = vadd.f32 %v838, %v836
    %v840 = vadd.f32 %v839, %v837
    %v841 = vrot.slane %v840, 4
    %v842 = vadd.f32 %v840, %v841
    %v843 = vrot.slane %v842, 2
    %v844 = vadd.f32 %v842, %v843
    %v845 = vrot.slane %v844, 1
    %v846 = vadd.f32 %v844, %v845
    %847 = vst [vmem:[#allocation17] sm:$0x1] %v846
    %v848 = vld [vmem:[#allocation15] sm:$0xff]
    %v849 = vld [vmem:[#allocation15 + $0x8] sm:$0xff]
    %v850 = vld [vmem:[#allocation15 + $0x10] sm:$0xf]
    %v851 = vmul.f32 %v746, %v746
    %v852 = vmul.f32 %v747, %v747
    %v853 = vmul.f32 %v748, %v748
    %v854 = vmul.f32 %v749, %v749
    %v855 = vsub.f32 1.0, %v851
    %v856 = vsub.f32 1.0, %v852
    %v857 = vsub.f32 1.0, %v853
    %v858 = vsub.f32 1.0, %v854
    %v859 = vmul.f32 %v756, %v855
    %v860 = vmul.f32 %v756, %v856
    %v861 = vmul.f32 %v756, %v857
    %v862 = vmul.f32 %v756, %v858
    %v864 = vsel %vm302, %v859, 0
    %v867 = vsel %vm302, %v860, 0
    %v870 = vsel %vm302, %v861, 0
    %v873 = vsel %vm302, %v862, 0
    %v876 = vsel %vm315, %v850, 0
    %878 = vmatprep.subr.mxu0 0.0
    %879 = vmatpush1.msra.mxu0 0.0
    %880 = vmatprep.subr.mxu0 0.0
    %881 = vmatpush1.msra.mxu0 0.0
    %882 = vmatprep.subr.mxu0 0.0
    %883 = vmatpush1.msra.mxu0 0.0
    %884 = vmatprep.subr.mxu0 0.0
    %885 = vmatpush1.msra.mxu0 0.0
    %886 = vmatprep.subr.mxu0 0.0
    %887 = vmatpush1.msra.mxu0 0.0
    %888 = vmatprep.subr.mxu0 0.0
    %889 = vmatpush1.msra.mxu0 0.0
    %890 = vmatprep.subr.mxu0 0.0
    %891 = vmatpush1.msra.mxu0 0.0
    %892 = vmatprep.subr.mxu0 0.0
    %893 = vmatpush1.msra.mxu0 0.0
    %894 = vmatprep.subr.mxu0 0.0
    %895 = vmatpush1.msra.mxu0 0.0
    %896 = vmatprep.subr.mxu0 0.0
    %897 = vmatpush1.msra.mxu0 0.0
    %898 = vmatprep.subr.mxu0 0.0
    %899 = vmatpush1.msra.mxu0 0.0
    %900 = vmatprep.subr.mxu0 0.0
    %901 = vmatpush1.msra.mxu0 0.0
    %902 = vmatprep.subr.mxu0 0.0
    %903 = vmatpush1.msra.mxu0 0.0
    %904 = vmatprep.subr.mxu0 0.0
    %905 = vmatpush1.msra.mxu0 %v876
    %906 = vmatprep.subr.mxu0 0.0
    %907 = vmatpush1.msra.mxu0 %v849
    %908 = vmatprep.subr.mxu0 0.0
    %909 = vmatpush1.msra.mxu0 %v848
    %910 = vmatprep.subr.mxu0 0.0
    %911 = vmatpush2.msra.mxu0 0.0
    %912 = vmatprep.subr.mxu0 0.0
    %913 = vmatpush2.msra.mxu0 0.0
    %914 = vmatprep.subr.mxu0 0.0
    %915 = vmatpush2.msra.mxu0 0.0
    %916 = vmatprep.subr.mxu0 0.0
    %917 = vmatpush2.msra.mxu0 0.0
    %918 = vmatprep.subr.mxu0 0.0
    %919 = vmatpush2.msra.mxu0 0.0
    %920 = vmatprep.subr.mxu0 0.0
    %921 = vmatpush2.msra.mxu0 0.0
    %922 = vmatprep.subr.mxu0 0.0
    %923 = vmatpush2.msra.mxu0 0.0
    %924 = vmatprep.subr.mxu0 0.0
    %925 = vmatpush2.msra.mxu0 0.0
    %926 = vmatprep.subr.mxu0 0.0
    %927 = vmatpush2.msra.mxu0 0.0
    %928 = vmatprep.subr.mxu0 0.0
    %929 = vmatpush2.msra.mxu0 0.0
    %930 = vmatprep.subr.mxu0 0.0
    %931 = vmatpush2.msra.mxu0 0.0
    %932 = vmatprep.subr.mxu0 0.0
    %933 = vmatpush2.msra.mxu0 0.0
    %934 = vmatprep.subr.mxu0 0.0
    %935 = vmatpush2.msra.mxu0 0.0
    %936 = vmatprep.subr.mxu0 0.0
    %937 = vmatpush2.msra.mxu0 0.0
    %938 = vmatprep.subr.mxu0 0.0
    %939 = vmatpush2.msra.mxu0 0.0
    %940 = vmatprep.subr.mxu0 0.0
    %941 = vmatpush2.msra.mxu0 0.0
    %942 = vmatprep.mubr.f32.mxu0 0.0
    %943 = vmatmul.mubr.f32.gmra.mxu0 %v864
    %v944 = vpop.f32.mrf.mxu0
    %v945 = vadd.f32 0.0, %v944
    %v946 = vpop.f32.mrf.mxu0
    %947 = vmatprep.mubr.f32.mxu0 0.0
    %948 = vmatmul.mubr.f32.gmra.mxu0 %v867
    %v949 = vpop.f32.mrf.mxu0
    %v950 = vadd.f32 0.0, %v949
    %v951 = vpop.f32.mrf.mxu0
    %952 = vmatprep.mubr.f32.mxu0 0.0
    %953 = vmatmul.mubr.f32.gmra.mxu0 %v870
    %v954 = vpop.f32.mrf.mxu0
    %v955 = vadd.f32 0.0, %v954
    %v956 = vpop.f32.mrf.mxu0
    %957 = vmatprep.mubr.f32.mxu0 0.0
    %958 = vmatmul.mubr.f32.gmra.mxu0 %v873
    %v959 = vpop.f32.mrf.mxu0
    %v960 = vadd.f32 0.0, %v959
    %v961 = vpop.f32.mrf.mxu0
    %962 = vdwg.mxu0
    %v963 = vld [vmem:[#allocation12] sm:$0xff]
    %v964 = vld [vmem:[#allocation12 + $0x8] sm:$0xff]
    %v965 = vld [vmem:[#allocation12 + $0x10] sm:$0xf]
    %v966 = vmul.f32 %v632, %v632
    %v967 = vmul.f32 %v633, %v633
    %v968 = vmul.f32 %v634, %v634
    %v969 = vmul.f32 %v635, %v635
    %v970 = vsub.f32 1.0, %v966
    %v971 = vsub.f32 1.0, %v967
    %v972 = vsub.f32 1.0, %v968
    %v973 = vsub.f32 1.0, %v969
    %v974 = vmul.f32 %v945, %v970
    %v975 = vmul.f32 %v950, %v971
    %v976 = vmul.f32 %v955, %v972
    %v977 = vmul.f32 %v960, %v973
    %v979 = vsel %vm302, %v974, 0
    %v982 = vsel %vm302, %v975, 0
    %v985 = vsel %vm302, %v976, 0
    %v988 = vsel %vm302, %v977, 0
    %v991 = vsel %vm315, %v965, 0
    %993 = vmatprep.subr.mxu0 0.0
    %994 = vmatpush1.msra.mxu0 0.0
    %995 = vmatprep.subr.mxu0 0.0
    %996 = vmatpush1.msra.mxu0 0.0
    %997 = vmatprep.subr.mxu0 0.0
    %998 = vmatpush1.msra.mxu0 0.0
    %999 = vmatprep.subr.mxu0 0.0
    %1000 = vmatpush1.msra.mxu0 0.0
    %1001 = vmatprep.subr.mxu0 0.0
    %1002 = vmatpush1.msra.mxu0 0.0
    %1003 = vmatprep.subr.mxu0 0.0
    %1004 = vmatpush1.msra.mxu0 0.0
    %1005 = vmatprep.subr.mxu0 0.0
    %1006 = vmatpush1.msra.mxu0 0.0
    %1007 = vmatprep.subr.mxu0 0.0
    %1008 = vmatpush1.msra.mxu0 0.0
    %1009 = vmatprep.subr.mxu0 0.0
    %1010 = vmatpush1.msra.mxu0 0.0
    %1011 = vmatprep.subr.mxu0 0.0
    %1012 = vmatpush1.msra.mxu0 0.0
    %1013 = vmatprep.subr.mxu0 0.0
    %1014 = vmatpush1.msra.mxu0 0.0
    %1015 = vmatprep.subr.mxu0 0.0
    %1016 = vmatpush1.msra.mxu0 0.0
    %1017 = vmatprep.subr.mxu0 0.0
    %1018 = vmatpush1.msra.mxu0 0.0
    %1019 = vmatprep.subr.mxu0 0.0
    %1020 = vmatpush1.msra.mxu0 %v991
    %1021 = vmatprep.subr.mxu0 0.0
    %1022 = vmatpush1.msra.mxu0 %v964
    %1023 = vmatprep.subr.mxu0 0.0
    %1024 = vmatpush1.msra.mxu0 %v963
    %1025 = vmatprep.subr.mxu0 0.0
    %1026 = vmatpush2.msra.mxu0 0.0
    %1027 = vmatprep.subr.mxu0 0.0
    %1028 = vmatpush2.msra.mxu0 0.0
    %1029 = vmatprep.subr.mxu0 0.0
    %1030 = vmatpush2.msra.mxu0 0.0
    %1031 = vmatprep.subr.mxu0 0.0
    %1032 = vmatpush2.msra.mxu0 0.0
    %1033 = vmatprep.subr.mxu0 0.0
    %1034 = vmatpush2.msra.mxu0 0.0
    %1035 = vmatprep.subr.mxu0 0.0
    %1036 = vmatpush2.msra.mxu0 0.0
    %1037 = vmatprep.subr.mxu0 0.0
    %1038 = vmatpush2.msra.mxu0 0.0
    %1039 = vmatprep.subr.mxu0 0.0
    %1040 = vmatpush2.msra.mxu0 0.0
    %1041 = vmatprep.subr.mxu0 0.0
    %1042 = vmatpush2.msra.mxu0 0.0
    %1043 = vmatprep.subr.mxu0 0.0
    %1044 = vmatpush2.msra.mxu0 0.0
    %1045 = vmatprep.subr.mxu0 0.0
    %1046 = vmatpush2.msra.mxu0 0.0
    %1047 = vmatprep.subr.mxu0 0.0
    %1048 = vmatpush2.msra.mxu0 0.0
    %1049 = vmatprep.subr.mxu0 0.0
    %1050 = vmatpush2.msra.mxu0 0.0
    %1051 = vmatprep.subr.mxu0 0.0
    %1052 = vmatpush2.msra.mxu0 0.0
    %1053 = vmatprep.subr.mxu0 0.0
    %1054 = vmatpush2.msra.mxu0 0.0
    %1055 = vmatprep.subr.mxu0 0.0
    %1056 = vmatpush2.msra.mxu0 0.0
    %1057 = vmatprep.mubr.f32.mxu0 0.0
    %1058 = vmatmul.mubr.f32.gmra.mxu0 %v979
    %v1059 = vpop.f32.mrf.mxu0
    %v1060 = vadd.f32 0.0, %v1059
    %v1061 = vpop.f32.mrf.mxu0
    %1062 = vmatprep.mubr.f32.mxu0 0.0
    %1063 = vmatmul.mubr.f32.gmra.mxu0 %v982
    %v1064 = vpop.f32.mrf.mxu0
    %v1065 = vadd.f32 0.0, %v1064
    %v1066 = vpop.f32.mrf.mxu0
    %1067 = vmatprep.mubr.f32.mxu0 0.0
    %1068 = vmatmul.mubr.f32.gmra.mxu0 %v985
    %v1069 = vpop.f32.mrf.mxu0
    %v1070 = vadd.f32 0.0, %v1069
    %v1071 = vpop.f32.mrf.mxu0
    %1072 = vmatprep.mubr.f32.mxu0 0.0
    %1073 = vmatmul.mubr.f32.gmra.mxu0 %v988
    %v1074 = vpop.f32.mrf.mxu0
    %v1075 = vadd.f32 0.0, %v1074
    %v1076 = vpop.f32.mrf.mxu0
    %1077 = vdwg.mxu0
    %v1078 = vld [vmem:[#allocation9] sm:$0xff]
    %v1079 = vld [vmem:[#allocation9 + $0x8] sm:$0xff]
    %v1080 = vld [vmem:[#allocation9 + $0x10] sm:$0xf]
    %v1081 = vmul.f32 %v518, %v518
    %v1082 = vmul.f32 %v519, %v519
    %v1083 = vmul.f32 %v520, %v520
    %v1084 = vmul.f32 %v521, %v521
    %v1085 = vsub.f32 1.0, %v1081
    %v1086 = vsub.f32 1.0, %v1082
    %v1087 = vsub.f32 1.0, %v1083
    %v1088 = vsub.f32 1.0, %v1084
    %v1089 = vmul.f32 %v1060, %v1085
    %v1090 = vmul.f32 %v1065, %v1086
    %v1091 = vmul.f32 %v1070, %v1087
    %v1092 = vmul.f32 %v1075, %v1088
    %v1094 = vsel %vm302, %v1089, 0
    %v1097 = vsel %vm302, %v1090, 0
    %v1100 = vsel %vm302, %v1091, 0
    %v1103 = vsel %vm302, %v1092, 0
    %v1106 = vsel %vm315, %v1080, 0
    %1108 = vmatprep.subr.mxu0 0.0
    %1109 = vmatpush1.msra.mxu0 0.0
    %1110 = vmatprep.subr.mxu0 0.0
    %1111 = vmatpush1.msra.mxu0 0.0
    %1112 = vmatprep.subr.mxu0 0.0
    %1113 = vmatpush1.msra.mxu0 0.0
    %1114 = vmatprep.subr.mxu0 0.0
    %1115 = vmatpush1.msra.mxu0 0.0
    %1116 = vmatprep.subr.mxu0 0.0
    %1117 = vmatpush1.msra.mxu0 0.0
    %1118 = vmatprep.subr.mxu0 0.0
    %1119 = vmatpush1.msra.mxu0 0.0
    %1120 = vmatprep.subr.mxu0 0.0
    %1121 = vmatpush1.msra.mxu0 0.0
    %1122 = vmatprep.subr.mxu0 0.0
    %1123 = vmatpush1.msra.mxu0 0.0
    %1124 = vmatprep.subr.mxu0 0.0
    %1125 = vmatpush1.msra.mxu0 0.0
    %1126 = vmatprep.subr.mxu0 0.0
    %1127 = vmatpush1.msra.mxu0 0.0
    %1128 = vmatprep.subr.mxu0 0.0
    %1129 = vmatpush1.msra.mxu0 0.0
    %1130 = vmatprep.subr.mxu0 0.0
    %1131 = vmatpush1.msra.mxu0 0.0
    %1132 = vmatprep.subr.mxu0 0.0
    %1133 = vmatpush1.msra.mxu0 0.0
    %1134 = vmatprep.subr.mxu0 0.0
    %1135 = vmatpush1.msra.mxu0 %v1106
    %1136 = vmatprep.subr.mxu0 0.0
    %1137 = vmatpush1.msra.mxu0 %v1079
    %1138 = vmatprep.subr.mxu0 0.0
    %1139 = vmatpush1.msra.mxu0 %v1078
    %1140 = vmatprep.subr.mxu0 0.0
    %1141 = vmatpush2.msra.mxu0 0.0
    %1142 = vmatprep.subr.mxu0 0.0
    %1143 = vmatpush2.msra.mxu0 0.0
    %1144 = vmatprep.subr.mxu0 0.0
    %1145 = vmatpush2.msra.mxu0 0.0
    %1146 = vmatprep.subr.mxu0 0.0
    %1147 = vmatpush2.msra.mxu0 0.0
    %1148 = vmatprep.subr.mxu0 0.0
    %1149 = vmatpush2.msra.mxu0 0.0
    %1150 = vmatprep.subr.mxu0 0.0
    %1151 = vmatpush2.msra.mxu0 0.0
    %1152 = vmatprep.subr.mxu0 0.0
    %1153 = vmatpush2.msra.mxu0 0.0
    %1154 = vmatprep.subr.mxu0 0.0
    %1155 = vmatpush2.msra.mxu0 0.0
    %1156 = vmatprep.subr.mxu0 0.0
    %1157 = vmatpush2.msra.mxu0 0.0
    %1158 = vmatprep.subr.mxu0 0.0
    %1159 = vmatpush2.msra.mxu0 0.0
    %1160 = vmatprep.subr.mxu0 0.0
    %1161 = vmatpush2.msra.mxu0 0.0
    %1162 = vmatprep.subr.mxu0 0.0
    %1163 = vmatpush2.msra.mxu0 0.0
    %1164 = vmatprep.subr.mxu0 0.0
    %1165 = vmatpush2.msra.mxu0 0.0
    %1166 = vmatprep.subr.mxu0 0.0
    %1167 = vmatpush2.msra.mxu0 0.0
    %1168 = vmatprep.subr.mxu0 0.0
    %1169 = vmatpush2.msra.mxu0 0.0
    %1170 = vmatprep.subr.mxu0 0.0
    %1171 = vmatpush2.msra.mxu0 0.0
    %1172 = vmatprep.mubr.f32.mxu0 0.0
    %1173 = vmatmul.mubr.f32.gmra.mxu0 %v1094
    %v1174 = vpop.f32.mrf.mxu0
    %v1175 = vadd.f32 0.0, %v1174
    %v1176 = vpop.f32.mrf.mxu0
    %1177 = vmatprep.mubr.f32.mxu0 0.0
    %1178 = vmatmul.mubr.f32.gmra.mxu0 %v1097
    %v1179 = vpop.f32.mrf.mxu0
    %v1180 = vadd.f32 0.0, %v1179
    %v1181 = vpop.f32.mrf.mxu0
    %1182 = vmatprep.mubr.f32.mxu0 0.0
    %1183 = vmatmul.mubr.f32.gmra.mxu0 %v1100
    %v1184 = vpop.f32.mrf.mxu0
    %v1185 = vadd.f32 0.0, %v1184
    %v1186 = vpop.f32.mrf.mxu0
    %1187 = vmatprep.mubr.f32.mxu0 0.0
    %1188 = vmatmul.mubr.f32.gmra.mxu0 %v1103
    %v1189 = vpop.f32.mrf.mxu0
    %v1190 = vadd.f32 0.0, %v1189
    %v1191 = vpop.f32.mrf.mxu0
    %1192 = vdwg.mxu0
    %v1193 = vld [vmem:[#allocation6] sm:$0xff]
    %v1194 = vld [vmem:[#allocation6 + $0x8] sm:$0xff]
    %v1195 = vld [vmem:[#allocation6 + $0x10] sm:$0xf]
    %v1196 = vmul.f32 %v404, %v404
    %v1197 = vmul.f32 %v405, %v405
    %v1198 = vmul.f32 %v406, %v406
    %v1199 = vmul.f32 %v407, %v407
    %v1200 = vsub.f32 1.0, %v1196
    %v1201 = vsub.f32 1.0, %v1197
    %v1202 = vsub.f32 1.0, %v1198
    %v1203 = vsub.f32 1.0, %v1199
    %v1204 = vmul.f32 %v1175, %v1200
    %v1205 = vmul.f32 %v1180, %v1201
    %v1206 = vmul.f32 %v1185, %v1202
    %v1207 = vmul.f32 %v1190, %v1203
    %v1209 = vsel %vm302, %v1204, 0
    %v1212 = vsel %vm302, %v1205, 0
    %v1215 = vsel %vm302, %v1206, 0
    %v1218 = vsel %vm302, %v1207, 0
    %v1221 = vsel %vm315, %v1195, 0
    %1223 = vmatprep.subr.mxu0 0.0
    %1224 = vmatpush1.msra.mxu0 0.0
    %1225 = vmatprep.subr.mxu0 0.0
    %1226 = vmatpush1.msra.mxu0 0.0
    %1227 = vmatprep.subr.mxu0 0.0
    %1228 = vmatpush1.msra.mxu0 0.0
    %1229 = vmatprep.subr.mxu0 0.0
    %1230 = vmatpush1.msra.mxu0 0.0
    %1231 = vmatprep.subr.mxu0 0.0
    %1232 = vmatpush1.msra.mxu0 0.0
    %1233 = vmatprep.subr.mxu0 0.0
    %1234 = vmatpush1.msra.mxu0 0.0
    %1235 = vmatprep.subr.mxu0 0.0
    %1236 = vmatpush1.msra.mxu0 0.0
    %1237 = vmatprep.subr.mxu0 0.0
    %1238 = vmatpush1.msra.mxu0 0.0
    %1239 = vmatprep.subr.mxu0 0.0
    %1240 = vmatpush1.msra.mxu0 0.0
    %1241 = vmatprep.subr.mxu0 0.0
    %1242 = vmatpush1.msra.mxu0 0.0
    %1243 = vmatprep.subr.mxu0 0.0
    %1244 = vmatpush1.msra.mxu0 0.0
    %1245 = vmatprep.subr.mxu0 0.0
    %1246 = vmatpush1.msra.mxu0 0.0
    %1247 = vmatprep.subr.mxu0 0.0
    %1248 = vmatpush1.msra.mxu0 0.0
    %1249 = vmatprep.subr.mxu0 0.0
    %1250 = vmatpush1.msra.mxu0 %v1221
    %1251 = vmatprep.subr.mxu0 0.0
    %1252 = vmatpush1.msra.mxu0 %v1194
    %1253 = vmatprep.subr.mxu0 0.0
    %1254 = vmatpush1.msra.mxu0 %v1193
    %1255 = vmatprep.subr.mxu0 0.0
    %1256 = vmatpush2.msra.mxu0 0.0
    %1257 = vmatprep.subr.mxu0 0.0
    %1258 = vmatpush2.msra.mxu0 0.0
    %1259 = vmatprep.subr.mxu0 0.0
    %1260 = vmatpush2.msra.mxu0 0.0
    %1261 = vmatprep.subr.mxu0 0.0
    %1262 = vmatpush2.msra.mxu0 0.0
    %1263 = vmatprep.subr.mxu0 0.0
    %1264 = vmatpush2.msra.mxu0 0.0
    %1265 = vmatprep.subr.mxu0 0.0
    %1266 = vmatpush2.msra.mxu0 0.0
    %1267 = vmatprep.subr.mxu0 0.0
    %1268 = vmatpush2.msra.mxu0 0.0
    %1269 = vmatprep.subr.mxu0 0.0
    %1270 = vmatpush2.msra.mxu0 0.0
    %1271 = vmatprep.subr.mxu0 0.0
    %1272 = vmatpush2.msra.mxu0 0.0
    %1273 = vmatprep.subr.mxu0 0.0
    %1274 = vmatpush2.msra.mxu0 0.0
    %1275 = vmatprep.subr.mxu0 0.0
    %1276 = vmatpush2.msra.mxu0 0.0
    %1277 = vmatprep.subr.mxu0 0.0
    %1278 = vmatpush2.msra.mxu0 0.0
    %1279 = vmatprep.subr.mxu0 0.0
    %1280 = vmatpush2.msra.mxu0 0.0
    %1281 = vmatprep.subr.mxu0 0.0
    %1282 = vmatpush2.msra.mxu0 0.0
    %1283 = vmatprep.subr.mxu0 0.0
    %1284 = vmatpush2.msra.mxu0 0.0
    %1285 = vmatprep.subr.mxu0 0.0
    %1286 = vmatpush2.msra.mxu0 0.0
    %1287 = vmatprep.mubr.f32.mxu0 0.0
    %1288 = vmatmul.mubr.f32.gmra.mxu0 %v1209
    %v1289 = vpop.f32.mrf.mxu0
    %v1290 = vadd.f32 0.0, %v1289
    %v1291 = vpop.f32.mrf.mxu0
    %1292 = vmatprep.mubr.f32.mxu0 0.0
    %1293 = vmatmul.mubr.f32.gmra.mxu0 %v1212
    %v1294 = vpop.f32.mrf.mxu0
    %v1295 = vadd.f32 0.0, %v1294
    %v1296 = vpop.f32.mrf.mxu0
    %1297 = vmatprep.mubr.f32.mxu0 0.0
    %1298 = vmatmul.mubr.f32.gmra.mxu0 %v1215
    %v1299 = vpop.f32.mrf.mxu0
    %v1300 = vadd.f32 0.0, %v1299
    %v1301 = vpop.f32.mrf.mxu0
    %1302 = vmatprep.mubr.f32.mxu0 0.0
    %1303 = vmatmul.mubr.f32.gmra.mxu0 %v1218
    %v1304 = vpop.f32.mrf.mxu0
    %v1305 = vadd.f32 0.0, %v1304
    %v1306 = vpop.f32.mrf.mxu0
    %1307 = vdwg.mxu0
    %v1308 = vld [vmem:[%s3] sm:$0xff]
    %v1309 = vld [vmem:[%s3 + $0x8] sm:$0xff]
    %v1310 = vld [vmem:[%s3 + $0x10] sm:$0xf]
    %v1311 = vmul.f32 %v288, %v288
    %v1312 = vmul.f32 %v289, %v289
    %v1313 = vmul.f32 %v290, %v290
    %v1314 = vmul.f32 %v291, %v291
    %v1315 = vsub.f32 1.0, %v1311
    %v1316 = vsub.f32 1.0, %v1312
    %v1317 = vsub.f32 1.0, %v1313
    %v1318 = vsub.f32 1.0, %v1314
    %v1319 = vmul.f32 %v1290, %v1315
    %v1320 = vmul.f32 %v1295, %v1316
    %v1321 = vmul.f32 %v1300, %v1317
    %v1322 = vmul.f32 %v1305, %v1318
    %v1324 = vsel %vm302, %v1319, 0
    %v1327 = vsel %vm302, %v1320, 0
    %v1330 = vsel %vm302, %v1321, 0
    %v1333 = vsel %vm302, %v1322, 0
    %v1336 = vsel %vm315, %v1310, 0
    %1338 = vmatprep.subr.mxu0 0.0
    %1339 = vmatpush1.msra.mxu0 0.0
    %1340 = vmatprep.subr.mxu0 0.0
    %1341 = vmatpush1.msra.mxu0 0.0
    %1342 = vmatprep.subr.mxu0 0.0
    %1343 = vmatpush1.msra.mxu0 0.0
    %1344 = vmatprep.subr.mxu0 0.0
    %1345 = vmatpush1.msra.mxu0 0.0
    %1346 = vmatprep.subr.mxu0 0.0
    %1347 = vmatpush1.msra.mxu0 0.0
    %1348 = vmatprep.subr.mxu0 0.0
    %1349 = vmatpush1.msra.mxu0 0.0
    %1350 = vmatprep.subr.mxu0 0.0
    %1351 = vmatpush1.msra.mxu0 0.0
    %1352 = vmatprep.subr.mxu0 0.0
    %1353 = vmatpush1.msra.mxu0 0.0
    %1354 = vmatprep.subr.mxu0 0.0
    %1355 = vmatpush1.msra.mxu0 0.0
    %1356 = vmatprep.subr.mxu0 0.0
    %1357 = vmatpush1.msra.mxu0 0.0
    %1358 = vmatprep.subr.mxu0 0.0
    %1359 = vmatpush1.msra.mxu0 0.0
    %1360 = vmatprep.subr.mxu0 0.0
    %1361 = vmatpush1.msra.mxu0 0.0
    %1362 = vmatprep.subr.mxu0 0.0
    %1363 = vmatpush1.msra.mxu0 0.0
    %1364 = vmatprep.subr.mxu0 0.0
    %1365 = vmatpush1.msra.mxu0 %v1336
    %1366 = vmatprep.subr.mxu0 0.0
    %1367 = vmatpush1.msra.mxu0 %v1309
    %1368 = vmatprep.subr.mxu0 0.0
    %1369 = vmatpush1.msra.mxu0 %v1308
    %1370 = vmatprep.subr.mxu0 0.0
    %1371 = vmatpush2.msra.mxu0 0.0
    %1372 = vmatprep.subr.mxu0 0.0
    %1373 = vmatpush2.msra.mxu0 0.0
    %1374 = vmatprep.subr.mxu0 0.0
    %1375 = vmatpush2.msra.mxu0 0.0
    %1376 = vmatprep.subr.mxu0 0.0
    %1377 = vmatpush2.msra.mxu0 0.0
    %1378 = vmatprep.subr.mxu0 0.0
    %1379 = vmatpush2.msra.mxu0 0.0
    %1380 = vmatprep.subr.mxu0 0.0
    %1381 = vmatpush2.msra.mxu0 0.0
    %1382 = vmatprep.subr.mxu0 0.0
    %1383 = vmatpush2.msra.mxu0 0.0
    %1384 = vmatprep.subr.mxu0 0.0
    %1385 = vmatpush2.msra.mxu0 0.0
    %1386 = vmatprep.subr.mxu0 0.0
    %1387 = vmatpush2.msra.mxu0 0.0
    %1388 = vmatprep.subr.mxu0 0.0
    %1389 = vmatpush2.msra.mxu0 0.0
    %1390 = vmatprep.subr.mxu0 0.0
    %1391 = vmatpush2.msra.mxu0 0.0
    %1392 = vmatprep.subr.mxu0 0.0
    %1393 = vmatpush2.msra.mxu0 0.0
    %1394 = vmatprep.subr.mxu0 0.0
    %1395 = vmatpush2.msra.mxu0 0.0
    %1396 = vmatprep.subr.mxu0 0.0
    %1397 = vmatpush2.msra.mxu0 0.0
    %1398 = vmatprep.subr.mxu0 0.0
    %1399 = vmatpush2.msra.mxu0 0.0
    %1400 = vmatprep.subr.mxu0 0.0
    %1401 = vmatpush2.msra.mxu0 0.0
    %1402 = vmatprep.mubr.f32.mxu0 0.0
    %1403 = vmatmul.mubr.f32.gmra.mxu0 %v1324
    %v1404 = vpop.f32.mrf.mxu0
    %v1405 = vadd.f32 0.0, %v1404
    %v1406 = vpop.f32.mrf.mxu0
    %1407 = vmatprep.mubr.f32.mxu0 0.0
    %1408 = vmatmul.mubr.f32.gmra.mxu0 %v1327
    %v1409 = vpop.f32.mrf.mxu0
    %v1410 = vadd.f32 0.0, %v1409
    %v1411 = vpop.f32.mrf.mxu0
    %1412 = vmatprep.mubr.f32.mxu0 0.0
    %1413 = vmatmul.mubr.f32.gmra.mxu0 %v1330
    %v1414 = vpop.f32.mrf.mxu0
    %v1415 = vadd.f32 0.0, %v1414
    %v1416 = vpop.f32.mrf.mxu0
    %1417 = vmatprep.mubr.f32.mxu0 0.0
    %1418 = vmatmul.mubr.f32.gmra.mxu0 %v1333
    %v1419 = vpop.f32.mrf.mxu0
    %v1420 = vadd.f32 0.0, %v1419
    %v1421 = vpop.f32.mrf.mxu0
    %1422 = vdwg.mxu0
    %v1423 = vsub.f32 0.0, %v1405
    %v1424 = vsub.f32 0.0, %v1410
    %v1425 = vsub.f32 0.0, %v1415
    %v1426 = vsub.f32 0.0, %v1420
    %1427 = vst.msk [vmem:[#allocation18] sm:$0xff] %vm190, %v1423
    %1428 = vst.msk [vmem:[#allocation18 + $0x8] sm:$0xff] %vm190, %v1424
    %1429 = vst.msk [vmem:[#allocation18 + $0x10] sm:$0xff] %vm190, %v1425
    %1430 = vst.msk [vmem:[#allocation18 + $0x18] sm:$0xff] %vm190, %v1426
    // Predicated region
    $region110: #{tpu_custom_call.1} parent=1 // pred_check
      _
    $region111: #{tpu_custom_call.1} parent=1 // pred_check_branch
      %1432 = sbr.rel (0) target = $region113
    $region112: #{tpu_custom_call.1} parent=1 // pred_region
      %s1434 = ssub.s32 16, 16
      %1435 = vsyncadd [#allocation5], %s1434
      %s1437 = sshll.u32 [#allocation17], 4
      %s1438 = int_to_ptr.vmem [resolvable:$true] %s1437
      %1440 = dma.vmem_to_hbm [thread:$0]  %s1438, 16, %s19, [#allocation5]
    $region113: #{tpu_custom_call.1} parent=1 // pred_fallthru
      _
    // Predicated region
    $region114: #{tpu_custom_call.1} parent=1 // pred_check
      _
    $region115: #{tpu_custom_call.1} parent=1 // pred_check_branch
      %1442 = sbr.rel (0) target = $region117
    $region116: #{tpu_custom_call.1} parent=1 // pred_region
      %s1444 = ssub.s32 512, 512
      %1445 = vsyncadd [#allocation19], %s1444
      %s1446 = sshll.u32 [#allocation18], 4
      %s1447 = int_to_ptr.vmem [resolvable:$true] %s1446
      %1452 = dma.vmem_to_hbm [thread:$0]  %s1447, 512, %s20, [#allocation19], 128, 128, 8
    $region117: #{tpu_custom_call.1} parent=1 // pred_fallthru
      _
    // Predicated region
    $region118: #{tpu_custom_call.1} parent=1 // pred_check
      _
    $region119: #{tpu_custom_call.1} parent=1 // pred_check_branch
      %1454 = sbr.rel (0) target = $region121
    $region120: #{tpu_custom_call.1} parent=1 // pred_region
      %1455 = dma.done [#allocation5], 16
    $region121: #{tpu_custom_call.1} parent=1 // pred_fallthru
      _
    // Predicated region
    $region122: #{tpu_custom_call.1} parent=1 // pred_check
      _
    $region123: #{tpu_custom_call.1} parent=1 // pred_check_branch
      %1457 = sbr.rel (0) target = $region125
    $region124: #{tpu_custom_call.1} parent=1 // pred_region
      %1458 = dma.done [#allocation19], 512
    $region125: #{tpu_custom_call.1} parent=1 // pred_fallthru
      _
    %1459 = vsyncpa [#allocation4], 1
    %1460 = vsyncpa [#allocation7], 1
    %1461 = vsyncpa [#allocation10], 1
    %1462 = vsyncpa [#allocation13], 1
    %1463 = vsyncpa [#allocation16], 1
    %1464 = vsyncpa [#allocation5], 1
    %1465 = vsyncpa [#allocation19], 1

</llo_original>
